<compile_context>
chip_gen: v6e
topology: v6e:2x2x1
jax: 0.10.0
libtpu: 0.0.40
codegen_flags: <defaults>
</compile_context>

<pallas_src>
import jax
import jax.numpy as jnp
from jax.experimental import pallas as pl
from jax.experimental.pallas import tpu as pltpu

LANE = 128
SUBLANE = 8


def _round_up(x, m):
    return ((x + m - 1) // m) * m


def _leaky_relu(v):
    # nn.LeakyReLU(0.2): slope < 1, so max(v, 0.2*v) == leaky_relu(v).
    return jnp.maximum(v, 0.2 * v)


# ----------------------------- Pallas kernel -------------------------------

def vae_forward_kernel(
    x_ref, eps_ref,
    w_in_ref, w_in2_ref, w_mv_ref, w_h_ref, w_h2_ref, w_out_ref,
    b_in_ref, b_in2_ref, b_mv_ref, b_h_ref, b_h2_ref, b_out_ref,
    out_ref,
):
    l_pad = eps_ref.shape[1]        # latent_dim padded to a multiple of 128
    o_pad = w_out_ref.shape[1]      # output_dim padded to a multiple of 128

    def dense(a, w_ref, b_ref):
        # bf16 operands on the MXU, f32 accumulation, f32 bias add on the VPU.
        y = jnp.dot(a.astype(w_ref.dtype), w_ref[...],
                    preferred_element_type=jnp.float32)
        return y + b_ref[...]

    # ----- Encoder -----
    h = _leaky_relu(dense(x_ref[...], w_in_ref, b_in_ref))
    h = _leaky_relu(dense(h, w_in2_ref, b_in2_ref))
    # Fused [mean | log_var] projection; both halves start at 128-aligned lanes.
    mv = dense(h, w_mv_ref, b_mv_ref)               # (tb, 2*l_pad)
    mean = mv[:, :l_pad]
    log_var = mv[:, l_pad:]

    # ----- Reparameterization: z = mean + exp(0.5*log_var) * eps -----
    z = mean + jnp.exp(0.5 * log_var) * eps_ref[...]

    # ----- Decoder -----
    d = _leaky_relu(dense(z, w_h_ref, b_h_ref))
    d = _leaky_relu(dense(d, w_h2_ref, b_h2_ref))
    logits = dense(d, w_out_ref, b_out_ref)

    # sigmoid = 1/(1+exp(-x)); exp + approx reciprocal both ride the EUP slot.
    # Clamp: the approximate reciprocal can land marginally outside [0, 1].
    x_hat = jnp.clip(pl.reciprocal(1.0 + jnp.exp(-logits), approx=True),
                     0.0, 1.0)

    # Single lane-dense output slab: [x_hat (o_pad) | mean (l_pad) | log_var (l_pad)].
    out_ref[:, :o_pad] = x_hat
    out_ref[:, o_pad:] = mv


# ------------------------------- Wrapper ------------------------------------

def _vmem_capacity_bytes():
    try:
        cap = getattr(pltpu.get_tpu_info(), "vmem_capacity_bytes", None)
        if cap:
            return int(cap)
    except Exception:
        pass
    return 64 << 20  # conservative default (v7x per-TensorCore VMEM)


def _pad_cols(a, to):
    return a if a.shape[1] == to else jnp.pad(a, ((0, 0), (0, to - a.shape[1])))


def _pad_rows(a, to):
    return a if a.shape[0] == to else jnp.pad(a, ((0, to - a.shape[0]), (0, 0)))


def vae_forward(x, eps, params):
    """x: (B, input_dim) f32, eps: (B, latent_dim) f32, params: dict of (W, b).

    Weights are (in_features, out_features) (pre-transposed vs torch), biases
    are (1, out_features). Returns (x_hat, mean, log_var).
    """
    B, input_dim = x.shape
    latent_dim = eps.shape[1]
    hidden_dim = params["w_in"].shape[1]
    output_dim = params["w_out"].shape[1]

    l_pad = _round_up(latent_dim, LANE)
    o_pad = _round_up(output_dim, LANE)
    out_width = o_pad + 2 * l_pad

    # --- pack operands: bf16 weights, lane-padded output-side columns,
    #     fused [mean | log_var] projection, zero-padded latent rows. ---
    bf16 = lambda w: w.astype(jnp.bfloat16)
    f32 = lambda b: b.astype(jnp.float32)
    w_in = bf16(params["w_in"])
    w_in2 = bf16(params["w_in2"])
    w_mv = bf16(jnp.concatenate([_pad_cols(params["w_mean"], l_pad),
                                 _pad_cols(params["w_var"], l_pad)], axis=1))
    w_h = bf16(_pad_rows(params["w_h"], l_pad))
    w_h2 = bf16(params["w_h2"])
    w_out = bf16(_pad_cols(params["w_out"], o_pad))
    b_in = f32(params["b_in"])
    b_in2 = f32(params["b_in2"])
    b_mv = f32(jnp.concatenate([_pad_cols(params["b_mean"], l_pad),
                                _pad_cols(params["b_var"], l_pad)], axis=1))
    b_h = f32(params["b_h"])
    b_h2 = f32(params["b_h2"])
    b_out = f32(_pad_cols(params["b_out"], o_pad))

    weights = (w_in, w_in2, w_mv, w_h, w_h2, w_out)
    biases = (b_in, b_in2, b_mv, b_h, b_h2, b_out)
    weight_bytes = sum(int(w.size) * 2 for w in weights)
    bias_bytes = sum(int(b.size) * 4 for b in biases)

    vmem_cap = _vmem_capacity_bytes()
    # TODO(synk): once resident bf16 weights approach ~40% of VMEM (hidden_dim
    # >= ~2k on v7x), tile the (H,H) layers over a hidden-dim reduction grid
    # axis with an f32 VMEM accumulator instead of keeping all weights resident.
    assert weight_bytes + bias_bytes < vmem_cap // 2, (
        "Resident weights exceed half of this generation's VMEM; tile hidden_dim.")

    # --- batch tiling: tiles are multiples of 8 rows, >= 2 grid steps when the
    #     batch allows (feeds both v7x TensorCores), capped by the VMEM budget.
    per_row_bytes = (
        2 * (input_dim * 2 + l_pad * 4 + out_width * 4)          # streamed I/O, 2x buffers
        + 4 * (2 * hidden_dim + 3 * l_pad + o_pad + out_width))  # f32 intermediates
    avail = int(0.75 * vmem_cap) - weight_bytes - bias_bytes
    max_tile = max(SUBLANE, (avail // max(per_row_bytes, 1)) // SUBLANE * SUBLANE)

    b8 = _round_up(max(B, SUBLANE), SUBLANE)
    if b8 >= 2 * SUBLANE:
        tile_b = max(SUBLANE, min(1024, (b8 // 2) // SUBLANE * SUBLANE))
    else:
        tile_b = SUBLANE
    tile_b = min(tile_b, max_tile)
    b_pad = _round_up(b8, tile_b)
    grid = (b_pad // tile_b,)

    # --- pad & cast the streamed inputs (bf16 x halves its HBM->VMEM bytes).
    x_p = _pad_rows(x, b_pad).astype(jnp.bfloat16)
    eps_p = _pad_cols(_pad_rows(eps.astype(jnp.float32), b_pad), l_pad)

    stream = lambda cols: pl.BlockSpec((tile_b, cols), lambda i: (i, 0))

    def make_in_specs(single_buffer_residents):
        if single_buffer_residents:
            resident = lambda a: pl.BlockSpec(a.shape, lambda i: (0, 0),
                                              pipeline_mode=pl.Buffered(1))
        else:
            resident = lambda a: pl.BlockSpec(a.shape, lambda i: (0, 0))
        return ([stream(input_dim), stream(l_pad)]
                + [resident(w) for w in weights]
                + [resident(b) for b in biases])

    out_spec = pl.BlockSpec((tile_b, out_width), lambda i: (i, 0))
    out_shape = jax.ShapeDtypeStruct((b_pad, out_width), jnp.float32)

    io_bytes = (int(x_p.size) * 2 + int(eps_p.size) * 4 + weight_bytes
                + bias_bytes + b_pad * out_width * 4)
    cost = pl.CostEstimate(
        flops=2 * b_pad * (input_dim * hidden_dim
                           + 2 * hidden_dim * hidden_dim
                           + hidden_dim * 2 * l_pad
                           + l_pad * hidden_dim
                           + hidden_dim * o_pad),
        transcendentals=b_pad * (l_pad + 2 * o_pad),
        bytes_accessed=io_bytes,
    )

    vmem_needed = (weight_bytes + bias_bytes
                   + 2 * tile_b * (input_dim * 2 + l_pad * 4 + out_width * 4)
                   + tile_b * 4 * (2 * hidden_dim + 3 * l_pad + o_pad + out_width))
    vmem_limit = int(min(int(0.8 * vmem_cap), max(2 * vmem_needed, 16 << 20)))

    def run(single_buffer_residents):
        return pl.pallas_call(
            vae_forward_kernel,
            grid=grid,
            in_specs=make_in_specs(single_buffer_residents),
            out_specs=out_spec,
            out_shape=out_shape,
            compiler_params=pltpu.CompilerParams(
                dimension_semantics=("parallel",),
                vmem_limit_bytes=vmem_limit,
            ),
            cost_estimate=cost,
        )(x_p, eps_p, *weights, *biases)

    try:
        out = run(True)    # single-buffered resident weights (halves their VMEM)
    except Exception:
        out = run(False)   # safe fallback: default double-buffered residents

    x_hat = out[:B, :output_dim]
    mean = out[:B, o_pad:o_pad + latent_dim]
    log_var = out[:B, o_pad + l_pad:o_pad + l_pad + latent_dim]
    return x_hat, mean, log_var


# ------------------------- Pure-JAX reference (check) -----------------------

def vae_forward_reference(x, eps, params):
    """Mirrors the kernel math (bf16 matmul inputs, f32 accumulation)."""
    def dense(a, w, b):
        return jnp.dot(a.astype(jnp.bfloat16), w.astype(jnp.bfloat16),
                       preferred_element_type=jnp.float32) + b

    h = _leaky_relu(dense(x, params["w_in"], params["b_in"]))
    h = _leaky_relu(dense(h, params["w_in2"], params["b_in2"]))
    mean = dense(h, params["w_mean"], params["b_mean"])
    log_var = dense(h, params["w_var"], params["b_var"])
    z = mean + jnp.exp(0.5 * log_var) * eps
    d = _leaky_relu(dense(z, params["w_h"], params["b_h"]))
    d = _leaky_relu(dense(d, params["w_h2"], params["b_h2"]))
    logits = dense(d, params["w_out"], params["b_out"])
    return jax.nn.sigmoid(logits), mean, log_var


# ------------------------------- Init ---------------------------------------

def init_linear(key, in_features, out_features):
    """PyTorch nn.Linear-style init; W already transposed to (in, out)."""
    kw, kb = jax.random.split(key)
    bound = 1.0 / jnp.sqrt(in_features)
    w = jax.random.uniform(kw, (in_features, out_features), jnp.float32,
                           -bound, bound)
    b = jax.random.uniform(kb, (1, out_features), jnp.float32, -bound, bound)
    return w, b


def init_params(key, input_dim, hidden_dim, latent_dim, output_dim):
    keys = jax.random.split(key, 7)
    p = {}
    p["w_in"], p["b_in"] = init_linear(keys[0], input_dim, hidden_dim)
    p["w_in2"], p["b_in2"] = init_linear(keys[1], hidden_dim, hidden_dim)
    p["w_mean"], p["b_mean"] = init_linear(keys[2], hidden_dim, latent_dim)
    p["w_var"], p["b_var"] = init_linear(keys[3], hidden_dim, latent_dim)
    p["w_h"], p["b_h"] = init_linear(keys[4], latent_dim, hidden_dim)
    p["w_h2"], p["b_h2"] = init_linear(keys[5], hidden_dim, hidden_dim)
    p["w_out"], p["b_out"] = init_linear(keys[6], hidden_dim, output_dim)
    return p


if __name__ == "__main__":
    # Small shapes consistent with the module (flattened images -> MLP VAE).
    # B=32 gives a 2-step "parallel" batch grid (feeds both v7x TensorCores).
    B = 32
    INPUT_DIM = 64        # e.g. flattened 8x8 image
    HIDDEN_DIM = 32
    LATENT_DIM = 16
    OUTPUT_DIM = INPUT_DIM

    root = jax.random.PRNGKey(0)
    k_params, k_x, k_eps = jax.random.split(root, 3)

    params = init_params(k_params, INPUT_DIM, HIDDEN_DIM, LATENT_DIM, OUTPUT_DIM)
    x = jax.random.uniform(k_x, (B, INPUT_DIM), jnp.float32)   # image-like [0,1)
    # Deterministic stand-in for torch.randn_like in the reparameterization.
    # TODO(synk): could be generated in-kernel via pltpu.prng_seed/stateful_normal
    # if bit-parity with an externally supplied eps is not required.
    eps = jax.random.normal(k_eps, (B, LATENT_DIM), jnp.float32)

    x_hat, mean, log_var = vae_forward(x, eps, params)
    jax.block_until_ready((x_hat, mean, log_var))

    assert x_hat.shape == (B, OUTPUT_DIM)
    assert mean.shape == (B, LATENT_DIM)
    assert log_var.shape == (B, LATENT_DIM)
    assert bool(jnp.all((x_hat >= 0.0) & (x_hat <= 1.0)))
    assert bool(jnp.all(jnp.isfinite(mean)) and jnp.all(jnp.isfinite(log_var)))

    # Loose tolerance: bf16 matmuls + approx reciprocal in the sigmoid.
    xr, mr, lvr = vae_forward_reference(x, eps, params)
    assert bool(jnp.allclose(x_hat, xr, rtol=1e-1, atol=1e-1))
    assert bool(jnp.allclose(mean, mr, rtol=1e-1, atol=1e-1))
    assert bool(jnp.allclose(log_var, lvr, rtol=1e-1, atol=1e-1))

    print("KERNEL_OK")
</pallas_src>

<mosaic_0001>
module attributes {stable_mosaic.version = 11 : i64} {
  func.func @vae_forward_kernel(%arg0: i32, %arg1: memref<16x64xbf16, #tpu.memory_space<vmem>>, %arg2: memref<16x128xf32, #tpu.memory_space<vmem>>, %arg3: memref<64x32xbf16, #tpu.memory_space<vmem>>, %arg4: memref<32x32xbf16, #tpu.memory_space<vmem>>, %arg5: memref<32x256xbf16, #tpu.memory_space<vmem>>, %arg6: memref<128x32xbf16, #tpu.memory_space<vmem>>, %arg7: memref<32x32xbf16, #tpu.memory_space<vmem>>, %arg8: memref<32x128xbf16, #tpu.memory_space<vmem>>, %arg9: memref<1x32xf32, #tpu.memory_space<vmem>>, %arg10: memref<1x32xf32, #tpu.memory_space<vmem>>, %arg11: memref<1x256xf32, #tpu.memory_space<vmem>>, %arg12: memref<1x32xf32, #tpu.memory_space<vmem>>, %arg13: memref<1x32xf32, #tpu.memory_space<vmem>>, %arg14: memref<1x128xf32, #tpu.memory_space<vmem>>, %arg15: memref<16x384xf32, #tpu.memory_space<vmem>>) attributes {dimension_semantics = [#tpu.dimension_semantics<parallel>], iteration_bounds = array<i64: 2>, scalar_prefetch = 0 : i64, scratch_operands = 0 : i64, tpu.core_type = #tpu.core_type<tc>, window_params = [{transform_indices = @transform_0, window_bounds = array<i64: 16, 64>}, {transform_indices = @transform_1, window_bounds = array<i64: 16, 128>}, {pipeline_mode = #tpu.pipeline_mode<synchronous>, transform_indices = @transform_2, window_bounds = array<i64: 64, 32>}, {pipeline_mode = #tpu.pipeline_mode<synchronous>, transform_indices = @transform_3, window_bounds = array<i64: 32, 32>}, {pipeline_mode = #tpu.pipeline_mode<synchronous>, transform_indices = @transform_4, window_bounds = array<i64: 32, 256>}, {pipeline_mode = #tpu.pipeline_mode<synchronous>, transform_indices = @transform_5, window_bounds = array<i64: 128, 32>}, {pipeline_mode = #tpu.pipeline_mode<synchronous>, transform_indices = @transform_6, window_bounds = array<i64: 32, 32>}, {pipeline_mode = #tpu.pipeline_mode<synchronous>, transform_indices = @transform_7, window_bounds = array<i64: 32, 128>}, {pipeline_mode = #tpu.pipeline_mode<synchronous>, transform_indices = @transform_8, window_bounds = array<i64: 1, 32>}, {pipeline_mode = #tpu.pipeline_mode<synchronous>, transform_indices = @transform_9, window_bounds = array<i64: 1, 32>}, {pipeline_mode = #tpu.pipeline_mode<synchronous>, transform_indices = @transform_10, window_bounds = array<i64: 1, 256>}, {pipeline_mode = #tpu.pipeline_mode<synchronous>, transform_indices = @transform_11, window_bounds = array<i64: 1, 32>}, {pipeline_mode = #tpu.pipeline_mode<synchronous>, transform_indices = @transform_12, window_bounds = array<i64: 1, 32>}, {pipeline_mode = #tpu.pipeline_mode<synchronous>, transform_indices = @transform_13, window_bounds = array<i64: 1, 128>}, {transform_indices = @transform_14, window_bounds = array<i64: 16, 384>}]} {
    %c0 = arith.constant 0 : index
    %c0_0 = arith.constant 0 : index
    %0 = vector.load %arg1[%c0, %c0_0] : memref<16x64xbf16, #tpu.memory_space<vmem>>, vector<16x64xbf16>
    %c0_1 = arith.constant 0 : index
    %c0_2 = arith.constant 0 : index
    %1 = vector.load %arg3[%c0_1, %c0_2] : memref<64x32xbf16, #tpu.memory_space<vmem>>, vector<64x32xbf16>
    %cst = arith.constant dense<0.000000e+00> : vector<16x32xf32>
    %2 = tpu.matmul %0, %1, %cst {dimension_numbers = #tpu.dot_dimension_numbers<[1], [0], [0], [1], [0, 0, 1, 1], [], []>} : vector<16x64xbf16>, vector<64x32xbf16>, vector<16x32xf32> -> vector<16x32xf32>
    %c0_3 = arith.constant 0 : index
    %c0_4 = arith.constant 0 : index
    %3 = vector.load %arg9[%c0_3, %c0_4] : memref<1x32xf32, #tpu.memory_space<vmem>>, vector<1x32xf32>
    %4 = vector.broadcast %3 : vector<1x32xf32> to vector<16x32xf32>
    %5 = arith.addf %2, %4 : vector<16x32xf32>
    %cst_5 = arith.constant 2.000000e-01 : f32
    %6 = vector.broadcast %cst_5 : f32 to vector<16x32xf32>
    %7 = arith.mulf %6, %5 : vector<16x32xf32>
    %8 = arith.maximumf %5, %7 : vector<16x32xf32>
    %9 = arith.truncf %8 : vector<16x32xf32> to vector<16x32xbf16>
    %c0_6 = arith.constant 0 : index
    %c0_7 = arith.constant 0 : index
    %10 = vector.load %arg4[%c0_6, %c0_7] : memref<32x32xbf16, #tpu.memory_space<vmem>>, vector<32x32xbf16>
    %cst_8 = arith.constant dense<0.000000e+00> : vector<16x32xf32>
    %11 = tpu.matmul %9, %10, %cst_8 {dimension_numbers = #tpu.dot_dimension_numbers<[1], [0], [0], [1], [0, 0, 1, 1], [], []>} : vector<16x32xbf16>, vector<32x32xbf16>, vector<16x32xf32> -> vector<16x32xf32>
    %c0_9 = arith.constant 0 : index
    %c0_10 = arith.constant 0 : index
    %12 = vector.load %arg10[%c0_9, %c0_10] : memref<1x32xf32, #tpu.memory_space<vmem>>, vector<1x32xf32>
    %13 = vector.broadcast %12 : vector<1x32xf32> to vector<16x32xf32>
    %14 = arith.addf %11, %13 : vector<16x32xf32>
    %cst_11 = arith.constant 2.000000e-01 : f32
    %15 = vector.broadcast %cst_11 : f32 to vector<16x32xf32>
    %16 = arith.mulf %15, %14 : vector<16x32xf32>
    %17 = arith.maximumf %14, %16 : vector<16x32xf32>
    %18 = arith.truncf %17 : vector<16x32xf32> to vector<16x32xbf16>
    %c0_12 = arith.constant 0 : index
    %c0_13 = arith.constant 0 : index
    %19 = vector.load %arg5[%c0_12, %c0_13] : memref<32x256xbf16, #tpu.memory_space<vmem>>, vector<32x256xbf16>
    %cst_14 = arith.constant dense<0.000000e+00> : vector<16x256xf32>
    %20 = tpu.matmul %18, %19, %cst_14 {dimension_numbers = #tpu.dot_dimension_numbers<[1], [0], [0], [1], [0, 0, 1, 1], [], []>} : vector<16x32xbf16>, vector<32x256xbf16>, vector<16x256xf32> -> vector<16x256xf32>
    %c0_15 = arith.constant 0 : index
    %c0_16 = arith.constant 0 : index
    %21 = vector.load %arg11[%c0_15, %c0_16] : memref<1x256xf32, #tpu.memory_space<vmem>>, vector<1x256xf32>
    %22 = vector.broadcast %21 : vector<1x256xf32> to vector<16x256xf32>
    %23 = arith.addf %20, %22 : vector<16x256xf32>
    %24 = vector.extract_strided_slice %23 {offsets = [0, 0], sizes = [16, 128], strides = [1, 1]} : vector<16x256xf32> to vector<16x128xf32>
    %25 = vector.extract_strided_slice %23 {offsets = [0, 128], sizes = [16, 128], strides = [1, 1]} : vector<16x256xf32> to vector<16x128xf32>
    %cst_17 = arith.constant 5.000000e-01 : f32
    %26 = vector.broadcast %cst_17 : f32 to vector<16x128xf32>
    %27 = arith.mulf %26, %25 : vector<16x128xf32>
    %28 = math.exp %27 : vector<16x128xf32>
    %c0_18 = arith.constant 0 : index
    %c0_19 = arith.constant 0 : index
    %29 = vector.load %arg2[%c0_18, %c0_19] : memref<16x128xf32, #tpu.memory_space<vmem>>, vector<16x128xf32>
    %30 = arith.mulf %28, %29 : vector<16x128xf32>
    %31 = arith.addf %24, %30 : vector<16x128xf32>
    %32 = arith.truncf %31 : vector<16x128xf32> to vector<16x128xbf16>
    %c0_20 = arith.constant 0 : index
    %c0_21 = arith.constant 0 : index
    %33 = vector.load %arg6[%c0_20, %c0_21] : memref<128x32xbf16, #tpu.memory_space<vmem>>, vector<128x32xbf16>
    %cst_22 = arith.constant dense<0.000000e+00> : vector<16x32xf32>
    %34 = tpu.matmul %32, %33, %cst_22 {dimension_numbers = #tpu.dot_dimension_numbers<[1], [0], [0], [1], [0, 0, 1, 1], [], []>} : vector<16x128xbf16>, vector<128x32xbf16>, vector<16x32xf32> -> vector<16x32xf32>
    %c0_23 = arith.constant 0 : index
    %c0_24 = arith.constant 0 : index
    %35 = vector.load %arg12[%c0_23, %c0_24] : memref<1x32xf32, #tpu.memory_space<vmem>>, vector<1x32xf32>
    %36 = vector.broadcast %35 : vector<1x32xf32> to vector<16x32xf32>
    %37 = arith.addf %34, %36 : vector<16x32xf32>
    %cst_25 = arith.constant 2.000000e-01 : f32
    %38 = vector.broadcast %cst_25 : f32 to vector<16x32xf32>
    %39 = arith.mulf %38, %37 : vector<16x32xf32>
    %40 = arith.maximumf %37, %39 : vector<16x32xf32>
    %41 = arith.truncf %40 : vector<16x32xf32> to vector<16x32xbf16>
    %c0_26 = arith.constant 0 : index
    %c0_27 = arith.constant 0 : index
    %42 = vector.load %arg7[%c0_26, %c0_27] : memref<32x32xbf16, #tpu.memory_space<vmem>>, vector<32x32xbf16>
    %cst_28 = arith.constant dense<0.000000e+00> : vector<16x32xf32>
    %43 = tpu.matmul %41, %42, %cst_28 {dimension_numbers = #tpu.dot_dimension_numbers<[1], [0], [0], [1], [0, 0, 1, 1], [], []>} : vector<16x32xbf16>, vector<32x32xbf16>, vector<16x32xf32> -> vector<16x32xf32>
    %c0_29 = arith.constant 0 : index
    %c0_30 = arith.constant 0 : index
    %44 = vector.load %arg13[%c0_29, %c0_30] : memref<1x32xf32, #tpu.memory_space<vmem>>, vector<1x32xf32>
    %45 = vector.broadcast %44 : vector<1x32xf32> to vector<16x32xf32>
    %46 = arith.addf %43, %45 : vector<16x32xf32>
    %cst_31 = arith.constant 2.000000e-01 : f32
    %47 = vector.broadcast %cst_31 : f32 to vector<16x32xf32>
    %48 = arith.mulf %47, %46 : vector<16x32xf32>
    %49 = arith.maximumf %46, %48 : vector<16x32xf32>
    %50 = arith.truncf %49 : vector<16x32xf32> to vector<16x32xbf16>
    %c0_32 = arith.constant 0 : index
    %c0_33 = arith.constant 0 : index
    %51 = vector.load %arg8[%c0_32, %c0_33] : memref<32x128xbf16, #tpu.memory_space<vmem>>, vector<32x128xbf16>
    %cst_34 = arith.constant dense<0.000000e+00> : vector<16x128xf32>
    %52 = tpu.matmul %50, %51, %cst_34 {dimension_numbers = #tpu.dot_dimension_numbers<[1], [0], [0], [1], [0, 0, 1, 1], [], []>} : vector<16x32xbf16>, vector<32x128xbf16>, vector<16x128xf32> -> vector<16x128xf32>
    %c0_35 = arith.constant 0 : index
    %c0_36 = arith.constant 0 : index
    %53 = vector.load %arg14[%c0_35, %c0_36] : memref<1x128xf32, #tpu.memory_space<vmem>>, vector<1x128xf32>
    %54 = vector.broadcast %53 : vector<1x128xf32> to vector<16x128xf32>
    %55 = arith.addf %52, %54 : vector<16x128xf32>
    %cst_37 = arith.constant 0.000000e+00 : f32
    %56 = vector.broadcast %cst_37 : f32 to vector<16x128xf32>
    %57 = arith.subf %56, %55 : vector<16x128xf32>
    %58 = math.exp %57 : vector<16x128xf32>
    %cst_38 = arith.constant 1.000000e+00 : f32
    %59 = vector.broadcast %cst_38 : f32 to vector<16x128xf32>
    %60 = arith.addf %59, %58 : vector<16x128xf32>
    %61 = tpu.reciprocal %60 {approx = true} : vector<16x128xf32> -> vector<16x128xf32>
    %cst_39 = arith.constant 0.000000e+00 : f32
    %cst_40 = arith.constant 1.000000e+00 : f32
    %62 = vector.broadcast %cst_39 : f32 to vector<16x128xf32>
    %63 = arith.maximumf %62, %61 : vector<16x128xf32>
    %64 = vector.broadcast %cst_40 : f32 to vector<16x128xf32>
    %65 = arith.minimumf %64, %63 : vector<16x128xf32>
    %c0_41 = arith.constant 0 : index
    %c0_42 = arith.constant 0 : index
    %66 = vector.load %arg15[%c0_41, %c0_42] : memref<16x384xf32, #tpu.memory_space<vmem>>, vector<16x128xf32>
    tpu.vector_store %arg15[%c0_41, %c0_42], %65 {strides = array<i32>} : memref<16x384xf32, #tpu.memory_space<vmem>>, vector<16x128xf32>,
    %c0_43 = arith.constant 0 : index
    %c128 = arith.constant 128 : index
    %67 = vector.load %arg15[%c0_43, %c128] : memref<16x384xf32, #tpu.memory_space<vmem>>, vector<16x256xf32>
    tpu.vector_store %arg15[%c0_43, %c128], %23 {strides = array<i32>} : memref<16x384xf32, #tpu.memory_space<vmem>>, vector<16x256xf32>,
    return
  }
  func.func @transform_0(%arg0: i32) -> (i32, i32) {
    %c0_i32 = arith.constant 0 : i32
    %c0_i32_0 = arith.constant 0 : i32
    return %arg0, %c0_i32 : i32, i32
  }
  func.func @transform_1(%arg0: i32) -> (i32, i32) {
    %c0_i32 = arith.constant 0 : i32
    %c0_i32_0 = arith.constant 0 : i32
    return %arg0, %c0_i32 : i32, i32
  }
  func.func @transform_2(%arg0: i32) -> (i32, i32) {
    %c0_i32 = arith.constant 0 : i32
    %c0_i32_0 = arith.constant 0 : i32
    %c0_i32_1 = arith.constant 0 : i32
    return %c0_i32, %c0_i32_0 : i32, i32
  }
  func.func @transform_3(%arg0: i32) -> (i32, i32) {
    %c0_i32 = arith.constant 0 : i32
    %c0_i32_0 = arith.constant 0 : i32
    %c0_i32_1 = arith.constant 0 : i32
    return %c0_i32, %c0_i32_0 : i32, i32
  }
  func.func @transform_4(%arg0: i32) -> (i32, i32) {
    %c0_i32 = arith.constant 0 : i32
    %c0_i32_0 = arith.constant 0 : i32
    %c0_i32_1 = arith.constant 0 : i32
    return %c0_i32, %c0_i32_0 : i32, i32
  }
  func.func @transform_5(%arg0: i32) -> (i32, i32) {
    %c0_i32 = arith.constant 0 : i32
    %c0_i32_0 = arith.constant 0 : i32
    %c0_i32_1 = arith.constant 0 : i32
    return %c0_i32, %c0_i32_0 : i32, i32
  }
  func.func @transform_6(%arg0: i32) -> (i32, i32) {
    %c0_i32 = arith.constant 0 : i32
    %c0_i32_0 = arith.constant 0 : i32
    %c0_i32_1 = arith.constant 0 : i32
    return %c0_i32, %c0_i32_0 : i32, i32
  }
  func.func @transform_7(%arg0: i32) -> (i32, i32) {
    %c0_i32 = arith.constant 0 : i32
    %c0_i32_0 = arith.constant 0 : i32
    %c0_i32_1 = arith.constant 0 : i32
    return %c0_i32, %c0_i32_0 : i32, i32
  }
  func.func @transform_8(%arg0: i32) -> (i32, i32) {
    %c0_i32 = arith.constant 0 : i32
    %c0_i32_0 = arith.constant 0 : i32
    %c0_i32_1 = arith.constant 0 : i32
    return %c0_i32, %c0_i32_0 : i32, i32
  }
  func.func @transform_9(%arg0: i32) -> (i32, i32) {
    %c0_i32 = arith.constant 0 : i32
    %c0_i32_0 = arith.constant 0 : i32
    %c0_i32_1 = arith.constant 0 : i32
    return %c0_i32, %c0_i32_0 : i32, i32
  }
  func.func @transform_10(%arg0: i32) -> (i32, i32) {
    %c0_i32 = arith.constant 0 : i32
    %c0_i32_0 = arith.constant 0 : i32
    %c0_i32_1 = arith.constant 0 : i32
    return %c0_i32, %c0_i32_0 : i32, i32
  }
  func.func @transform_11(%arg0: i32) -> (i32, i32) {
    %c0_i32 = arith.constant 0 : i32
    %c0_i32_0 = arith.constant 0 : i32
    %c0_i32_1 = arith.constant 0 : i32
    return %c0_i32, %c0_i32_0 : i32, i32
  }
  func.func @transform_12(%arg0: i32) -> (i32, i32) {
    %c0_i32 = arith.constant 0 : i32
    %c0_i32_0 = arith.constant 0 : i32
    %c0_i32_1 = arith.constant 0 : i32
    return %c0_i32, %c0_i32_0 : i32, i32
  }
  func.func @transform_13(%arg0: i32) -> (i32, i32) {
    %c0_i32 = arith.constant 0 : i32
    %c0_i32_0 = arith.constant 0 : i32
    %c0_i32_1 = arith.constant 0 : i32
    return %c0_i32, %c0_i32_0 : i32, i32
  }
  func.func @transform_14(%arg0: i32) -> (i32, i32) {
    %c0_i32 = arith.constant 0 : i32
    %c0_i32_0 = arith.constant 0 : i32
    return %arg0, %c0_i32 : i32, i32
  }
}

module attributes {stable_mosaic.version = 11 : i64} {
  func.func @vae_forward_kernel(%arg0: i32, %arg1: memref<16x64xbf16, #tpu.memory_space<vmem>>, %arg2: memref<16x128xf32, #tpu.memory_space<vmem>>, %arg3: memref<64x32xbf16, #tpu.memory_space<vmem>>, %arg4: memref<32x32xbf16, #tpu.memory_space<vmem>>, %arg5: memref<32x256xbf16, #tpu.memory_space<vmem>>, %arg6: memref<128x32xbf16, #tpu.memory_space<vmem>>, %arg7: memref<32x32xbf16, #tpu.memory_space<vmem>>, %arg8: memref<32x128xbf16, #tpu.memory_space<vmem>>, %arg9: memref<1x32xf32, #tpu.memory_space<vmem>>, %arg10: memref<1x32xf32, #tpu.memory_space<vmem>>, %arg11: memref<1x256xf32, #tpu.memory_space<vmem>>, %arg12: memref<1x32xf32, #tpu.memory_space<vmem>>, %arg13: memref<1x32xf32, #tpu.memory_space<vmem>>, %arg14: memref<1x128xf32, #tpu.memory_space<vmem>>, %arg15: memref<16x384xf32, #tpu.memory_space<vmem>>) attributes {dimension_semantics = [#tpu.dimension_semantics<parallel>], iteration_bounds = array<i64: 2>, scalar_prefetch = 0 : i64, scratch_operands = 0 : i64, tpu.core_type = #tpu.core_type<tc>, window_params = [{transform_indices = @transform_0, window_bounds = array<i64: 16, 64>}, {transform_indices = @transform_1, window_bounds = array<i64: 16, 128>}, {pipeline_mode = #tpu.pipeline_mode<synchronous>, transform_indices = @transform_2, window_bounds = array<i64: 64, 32>}, {pipeline_mode = #tpu.pipeline_mode<synchronous>, transform_indices = @transform_3, window_bounds = array<i64: 32, 32>}, {pipeline_mode = #tpu.pipeline_mode<synchronous>, transform_indices = @transform_4, window_bounds = array<i64: 32, 256>}, {pipeline_mode = #tpu.pipeline_mode<synchronous>, transform_indices = @transform_5, window_bounds = array<i64: 128, 32>}, {pipeline_mode = #tpu.pipeline_mode<synchronous>, transform_indices = @transform_6, window_bounds = array<i64: 32, 32>}, {pipeline_mode = #tpu.pipeline_mode<synchronous>, transform_indices = @transform_7, window_bounds = array<i64: 32, 128>}, {pipeline_mode = #tpu.pipeline_mode<synchronous>, transform_indices = @transform_8, window_bounds = array<i64: 1, 32>}, {pipeline_mode = #tpu.pipeline_mode<synchronous>, transform_indices = @transform_9, window_bounds = array<i64: 1, 32>}, {pipeline_mode = #tpu.pipeline_mode<synchronous>, transform_indices = @transform_10, window_bounds = array<i64: 1, 256>}, {pipeline_mode = #tpu.pipeline_mode<synchronous>, transform_indices = @transform_11, window_bounds = array<i64: 1, 32>}, {pipeline_mode = #tpu.pipeline_mode<synchronous>, transform_indices = @transform_12, window_bounds = array<i64: 1, 32>}, {pipeline_mode = #tpu.pipeline_mode<synchronous>, transform_indices = @transform_13, window_bounds = array<i64: 1, 128>}, {transform_indices = @transform_14, window_bounds = array<i64: 16, 384>}]} {
    %c0 = arith.constant 0 : index
    %c0_0 = arith.constant 0 : index
    %0 = vector.load %arg1[%c0, %c0_0] : memref<16x64xbf16, #tpu.memory_space<vmem>>, vector<16x64xbf16>
    %c0_1 = arith.constant 0 : index
    %c0_2 = arith.constant 0 : index
    %1 = vector.load %arg3[%c0_1, %c0_2] : memref<64x32xbf16, #tpu.memory_space<vmem>>, vector<64x32xbf16>
    %cst = arith.constant dense<0.000000e+00> : vector<16x32xf32>
    %2 = tpu.matmul %0, %1, %cst {dimension_numbers = #tpu.dot_dimension_numbers<[1], [0], [0], [1], [0, 0, 1, 1], [], []>} : vector<16x64xbf16>, vector<64x32xbf16>, vector<16x32xf32> -> vector<16x32xf32>
    %c0_3 = arith.constant 0 : index
    %c0_4 = arith.constant 0 : index
    %3 = vector.load %arg9[%c0_3, %c0_4] : memref<1x32xf32, #tpu.memory_space<vmem>>, vector<1x32xf32>
    %4 = vector.broadcast %3 : vector<1x32xf32> to vector<16x32xf32>
    %5 = arith.addf %2, %4 : vector<16x32xf32>
    %cst_5 = arith.constant 2.000000e-01 : f32
    %6 = vector.broadcast %cst_5 : f32 to vector<16x32xf32>
    %7 = arith.mulf %6, %5 : vector<16x32xf32>
    %8 = arith.maximumf %5, %7 : vector<16x32xf32>
    %9 = arith.truncf %8 : vector<16x32xf32> to vector<16x32xbf16>
    %c0_6 = arith.constant 0 : index
    %c0_7 = arith.constant 0 : index
    %10 = vector.load %arg4[%c0_6, %c0_7] : memref<32x32xbf16, #tpu.memory_space<vmem>>, vector<32x32xbf16>
    %cst_8 = arith.constant dense<0.000000e+00> : vector<16x32xf32>
    %11 = tpu.matmul %9, %10, %cst_8 {dimension_numbers = #tpu.dot_dimension_numbers<[1], [0], [0], [1], [0, 0, 1, 1], [], []>} : vector<16x32xbf16>, vector<32x32xbf16>, vector<16x32xf32> -> vector<16x32xf32>
    %c0_9 = arith.constant 0 : index
    %c0_10 = arith.constant 0 : index
    %12 = vector.load %arg10[%c0_9, %c0_10] : memref<1x32xf32, #tpu.memory_space<vmem>>, vector<1x32xf32>
    %13 = vector.broadcast %12 : vector<1x32xf32> to vector<16x32xf32>
    %14 = arith.addf %11, %13 : vector<16x32xf32>
    %cst_11 = arith.constant 2.000000e-01 : f32
    %15 = vector.broadcast %cst_11 : f32 to vector<16x32xf32>
    %16 = arith.mulf %15, %14 : vector<16x32xf32>
    %17 = arith.maximumf %14, %16 : vector<16x32xf32>
    %18 = arith.truncf %17 : vector<16x32xf32> to vector<16x32xbf16>
    %c0_12 = arith.constant 0 : index
    %c0_13 = arith.constant 0 : index
    %19 = vector.load %arg5[%c0_12, %c0_13] : memref<32x256xbf16, #tpu.memory_space<vmem>>, vector<32x256xbf16>
    %cst_14 = arith.constant dense<0.000000e+00> : vector<16x256xf32>
    %20 = tpu.matmul %18, %19, %cst_14 {dimension_numbers = #tpu.dot_dimension_numbers<[1], [0], [0], [1], [0, 0, 1, 1], [], []>} : vector<16x32xbf16>, vector<32x256xbf16>, vector<16x256xf32> -> vector<16x256xf32>
    %c0_15 = arith.constant 0 : index
    %c0_16 = arith.constant 0 : index
    %21 = vector.load %arg11[%c0_15, %c0_16] : memref<1x256xf32, #tpu.memory_space<vmem>>, vector<1x256xf32>
    %22 = vector.broadcast %21 : vector<1x256xf32> to vector<16x256xf32>
    %23 = arith.addf %20, %22 : vector<16x256xf32>
    %24 = vector.extract_strided_slice %23 {offsets = [0, 0], sizes = [16, 128], strides = [1, 1]} : vector<16x256xf32> to vector<16x128xf32>
    %25 = vector.extract_strided_slice %23 {offsets = [0, 128], sizes = [16, 128], strides = [1, 1]} : vector<16x256xf32> to vector<16x128xf32>
    %cst_17 = arith.constant 5.000000e-01 : f32
    %26 = vector.broadcast %cst_17 : f32 to vector<16x128xf32>
    %27 = arith.mulf %26, %25 : vector<16x128xf32>
    %28 = math.exp %27 : vector<16x128xf32>
    %c0_18 = arith.constant 0 : index
    %c0_19 = arith.constant 0 : index
    %29 = vector.load %arg2[%c0_18, %c0_19] : memref<16x128xf32, #tpu.memory_space<vmem>>, vector<16x128xf32>
    %30 = arith.mulf %28, %29 : vector<16x128xf32>
    %31 = arith.addf %24, %30 : vector<16x128xf32>
    %32 = arith.truncf %31 : vector<16x128xf32> to vector<16x128xbf16>
    %c0_20 = arith.constant 0 : index
    %c0_21 = arith.constant 0 : index
    %33 = vector.load %arg6[%c0_20, %c0_21] : memref<128x32xbf16, #tpu.memory_space<vmem>>, vector<128x32xbf16>
    %cst_22 = arith.constant dense<0.000000e+00> : vector<16x32xf32>
    %34 = tpu.matmul %32, %33, %cst_22 {dimension_numbers = #tpu.dot_dimension_numbers<[1], [0], [0], [1], [0, 0, 1, 1], [], []>} : vector<16x128xbf16>, vector<128x32xbf16>, vector<16x32xf32> -> vector<16x32xf32>
    %c0_23 = arith.constant 0 : index
    %c0_24 = arith.constant 0 : index
    %35 = vector.load %arg12[%c0_23, %c0_24] : memref<1x32xf32, #tpu.memory_space<vmem>>, vector<1x32xf32>
    %36 = vector.broadcast %35 : vector<1x32xf32> to vector<16x32xf32>
    %37 = arith.addf %34, %36 : vector<16x32xf32>
    %cst_25 = arith.constant 2.000000e-01 : f32
    %38 = vector.broadcast %cst_25 : f32 to vector<16x32xf32>
    %39 = arith.mulf %38, %37 : vector<16x32xf32>
    %40 = arith.maximumf %37, %39 : vector<16x32xf32>
    %41 = arith.truncf %40 : vector<16x32xf32> to vector<16x32xbf16>
    %c0_26 = arith.constant 0 : index
    %c0_27 = arith.constant 0 : index
    %42 = vector.load %arg7[%c0_26, %c0_27] : memref<32x32xbf16, #tpu.memory_space<vmem>>, vector<32x32xbf16>
    %cst_28 = arith.constant dense<0.000000e+00> : vector<16x32xf32>
    %43 = tpu.matmul %41, %42, %cst_28 {dimension_numbers = #tpu.dot_dimension_numbers<[1], [0], [0], [1], [0, 0, 1, 1], [], []>} : vector<16x32xbf16>, vector<32x32xbf16>, vector<16x32xf32> -> vector<16x32xf32>
    %c0_29 = arith.constant 0 : index
    %c0_30 = arith.constant 0 : index
    %44 = vector.load %arg13[%c0_29, %c0_30] : memref<1x32xf32, #tpu.memory_space<vmem>>, vector<1x32xf32>
    %45 = vector.broadcast %44 : vector<1x32xf32> to vector<16x32xf32>
    %46 = arith.addf %43, %45 : vector<16x32xf32>
    %cst_31 = arith.constant 2.000000e-01 : f32
    %47 = vector.broadcast %cst_31 : f32 to vector<16x32xf32>
    %48 = arith.mulf %47, %46 : vector<16x32xf32>
    %49 = arith.maximumf %46, %48 : vector<16x32xf32>
    %50 = arith.truncf %49 : vector<16x32xf32> to vector<16x32xbf16>
    %c0_32 = arith.constant 0 : index
    %c0_33 = arith.constant 0 : index
    %51 = vector.load %arg8[%c0_32, %c0_33] : memref<32x128xbf16, #tpu.memory_space<vmem>>, vector<32x128xbf16>
    %cst_34 = arith.constant dense<0.000000e+00> : vector<16x128xf32>
    %52 = tpu.matmul %50, %51, %cst_34 {dimension_numbers = #tpu.dot_dimension_numbers<[1], [0], [0], [1], [0, 0, 1, 1], [], []>} : vector<16x32xbf16>, vector<32x128xbf16>, vector<16x128xf32> -> vector<16x128xf32>
    %c0_35 = arith.constant 0 : index
    %c0_36 = arith.constant 0 : index
    %53 = vector.load %arg14[%c0_35, %c0_36] : memref<1x128xf32, #tpu.memory_space<vmem>>, vector<1x128xf32>
    %54 = vector.broadcast %53 : vector<1x128xf32> to vector<16x128xf32>
    %55 = arith.addf %52, %54 : vector<16x128xf32>
    %cst_37 = arith.constant 0.000000e+00 : f32
    %56 = vector.broadcast %cst_37 : f32 to vector<16x128xf32>
    %57 = arith.subf %56, %55 : vector<16x128xf32>
    %58 = math.exp %57 : vector<16x128xf32>
    %cst_38 = arith.constant 1.000000e+00 : f32
    %59 = vector.broadcast %cst_38 : f32 to vector<16x128xf32>
    %60 = arith.addf %59, %58 : vector<16x128xf32>
    %61 = tpu.reciprocal %60 {approx = true} : vector<16x128xf32> -> vector<16x128xf32>
    %cst_39 = arith.constant 0.000000e+00 : f32
    %cst_40 = arith.constant 1.000000e+00 : f32
    %62 = vector.broadcast %cst_39 : f32 to vector<16x128xf32>
    %63 = arith.maximumf %62, %61 : vector<16x128xf32>
    %64 = vector.broadcast %cst_40 : f32 to vector<16x128xf32>
    %65 = arith.minimumf %64, %63 : vector<16x128xf32>
    %c0_41 = arith.constant 0 : index
    %c0_42 = arith.constant 0 : index
    %66 = vector.load %arg15[%c0_41, %c0_42] : memref<16x384xf32, #tpu.memory_space<vmem>>, vector<16x128xf32>
    tpu.vector_store %arg15[%c0_41, %c0_42], %65 {strides = array<i32>} : memref<16x384xf32, #tpu.memory_space<vmem>>, vector<16x128xf32>,
    %c0_43 = arith.constant 0 : index
    %c128 = arith.constant 128 : index
    %67 = vector.load %arg15[%c0_43, %c128] : memref<16x384xf32, #tpu.memory_space<vmem>>, vector<16x256xf32>
    tpu.vector_store %arg15[%c0_43, %c128], %23 {strides = array<i32>} : memref<16x384xf32, #tpu.memory_space<vmem>>, vector<16x256xf32>,
    return
  }
  func.func @transform_0(%arg0: i32) -> (i32, i32) {
    %c0_i32 = arith.constant 0 : i32
    %c0_i32_0 = arith.constant 0 : i32
    return %arg0, %c0_i32 : i32, i32
  }
  func.func @transform_1(%arg0: i32) -> (i32, i32) {
    %c0_i32 = arith.constant 0 : i32
    %c0_i32_0 = arith.constant 0 : i32
    return %arg0, %c0_i32 : i32, i32
  }
  func.func @transform_2(%arg0: i32) -> (i32, i32) {
    %c0_i32 = arith.constant 0 : i32
    %c0_i32_0 = arith.constant 0 : i32
    %c0_i32_1 = arith.constant 0 : i32
    return %c0_i32, %c0_i32_0 : i32, i32
  }
  func.func @transform_3(%arg0: i32) -> (i32, i32) {
    %c0_i32 = arith.constant 0 : i32
    %c0_i32_0 = arith.constant 0 : i32
    %c0_i32_1 = arith.constant 0 : i32
    return %c0_i32, %c0_i32_0 : i32, i32
  }
  func.func @transform_4(%arg0: i32) -> (i32, i32) {
    %c0_i32 = arith.constant 0 : i32
    %c0_i32_0 = arith.constant 0 : i32
    %c0_i32_1 = arith.constant 0 : i32
    return %c0_i32, %c0_i32_0 : i32, i32
  }
  func.func @transform_5(%arg0: i32) -> (i32, i32) {
    %c0_i32 = arith.constant 0 : i32
    %c0_i32_0 = arith.constant 0 : i32
    %c0_i32_1 = arith.constant 0 : i32
    return %c0_i32, %c0_i32_0 : i32, i32
  }
  func.func @transform_6(%arg0: i32) -> (i32, i32) {
    %c0_i32 = arith.constant 0 : i32
    %c0_i32_0 = arith.constant 0 : i32
    %c0_i32_1 = arith.constant 0 : i32
    return %c0_i32, %c0_i32_0 : i32, i32
  }
  func.func @transform_7(%arg0: i32) -> (i32, i32) {
    %c0_i32 = arith.constant 0 : i32
    %c0_i32_0 = arith.constant 0 : i32
    %c0_i32_1 = arith.constant 0 : i32
    return %c0_i32, %c0_i32_0 : i32, i32
  }
  func.func @transform_8(%arg0: i32) -> (i32, i32) {
    %c0_i32 = arith.constant 0 : i32
    %c0_i32_0 = arith.constant 0 : i32
    %c0_i32_1 = arith.constant 0 : i32
    return %c0_i32, %c0_i32_0 : i32, i32
  }
  func.func @transform_9(%arg0: i32) -> (i32, i32) {
    %c0_i32 = arith.constant 0 : i32
    %c0_i32_0 = arith.constant 0 : i32
    %c0_i32_1 = arith.constant 0 : i32
    return %c0_i32, %c0_i32_0 : i32, i32
  }
  func.func @transform_10(%arg0: i32) -> (i32, i32) {
    %c0_i32 = arith.constant 0 : i32
    %c0_i32_0 = arith.constant 0 : i32
    %c0_i32_1 = arith.constant 0 : i32
    return %c0_i32, %c0_i32_0 : i32, i32
  }
  func.func @transform_11(%arg0: i32) -> (i32, i32) {
    %c0_i32 = arith.constant 0 : i32
    %c0_i32_0 = arith.constant 0 : i32
    %c0_i32_1 = arith.constant 0 : i32
    return %c0_i32, %c0_i32_0 : i32, i32
  }
  func.func @transform_12(%arg0: i32) -> (i32, i32) {
    %c0_i32 = arith.constant 0 : i32
    %c0_i32_0 = arith.constant 0 : i32
    %c0_i32_1 = arith.constant 0 : i32
    return %c0_i32, %c0_i32_0 : i32, i32
  }
  func.func @transform_13(%arg0: i32) -> (i32, i32) {
    %c0_i32 = arith.constant 0 : i32
    %c0_i32_0 = arith.constant 0 : i32
    %c0_i32_1 = arith.constant 0 : i32
    return %c0_i32, %c0_i32_0 : i32, i32
  }
  func.func @transform_14(%arg0: i32) -> (i32, i32) {
    %c0_i32 = arith.constant 0 : i32
    %c0_i32_0 = arith.constant 0 : i32
    return %arg0, %c0_i32 : i32, i32
  }
}

</mosaic_0001>

<llo_original>
// kernel: tpu_custom_call.1
$region0: #{tpu_custom_call.1}
  #allocation0 [shape = 'u32[]', space=smem, size = 0x4, offset = 0x4, fixed_abs, tag = 'smem constant byte address 0x4 - core index']
  #allocation1 [shape = 'u32[144,128]{1,0:T(1,128)}', space=vmem, size = 0x12000, scoped, tag = 'internal scratch']
  %s0 = inlined_call_operand.vmem [shape: bf16[32,64], index: 0, kind: input, shape index: {}]
  %s1 = inlined_call_operand.vmem [shape: f32[32,128], index: 1, kind: input, shape index: {}]
  %s2 = inlined_call_operand.vmem [shape: bf16[64,32], index: 2, kind: input, shape index: {}]
  %s3 = inlined_call_operand.vmem [shape: bf16[32,32], index: 3, kind: input, shape index: {}]
  %s4 = inlined_call_operand.vmem [shape: bf16[32,256], index: 4, kind: input, shape index: {}]
  %s5 = inlined_call_operand.vmem [shape: bf16[128,32], index: 5, kind: input, shape index: {}]
  %s6 = inlined_call_operand.vmem [shape: bf16[32,32], index: 6, kind: input, shape index: {}]
  %s7 = inlined_call_operand.hbm [shape: bf16[32,128], index: 7, kind: input, shape index: {}]
  %s8 = inlined_call_operand.vmem [shape: f32[1,32], index: 8, kind: input, shape index: {}]
  %s9 = inlined_call_operand.vmem [shape: f32[1,32], index: 9, kind: input, shape index: {}]
  %s10 = inlined_call_operand.vmem [shape: f32[1,256], index: 10, kind: input, shape index: {}]
  %s11 = inlined_call_operand.vmem [shape: f32[1,32], index: 11, kind: input, shape index: {}]
  %s12 = inlined_call_operand.vmem [shape: f32[1,32], index: 12, kind: input, shape index: {}]
  %s13 = inlined_call_operand.vmem [shape: f32[1,128], index: 13, kind: input, shape index: {}]
  %s14 = inlined_call_operand.hbm [shape: f32[32,384], index: 14, kind: output, shape index: {}]
  %s15 = sld [smem:[#allocation0]]
  $region93: #{tpu_custom_call.1} parent=0
    _
  %s17 = ssub.s32 1, %s15
  %s18 = scalar_select 0, %s17, %s15
  $region1: #{tpu_custom_call.1} parent=0
    #allocation2 [shape = 'u8[8192]{0}', space=vmem, size = 0x2000, scoped, tag = 'input window, operand 7, single buffered']
    #allocation3 [shape = 's32[2]{0}', space=sflag, size = 0x8, scoped, tag = 'scoped memory for tpu_custom_call.1']
    #allocation4 [shape = 's32[2]{0}', space=sflag, size = 0x8, scoped, tag = 'scoped memory for tpu_custom_call.1']
    #allocation5 [shape = 'u8[49152]{0}', space=vmem, size = 0xc000, scoped, tag = 'output window, operand 0']
    %19 = vsyncpa [#allocation3], 0
    %20 = vsyncpa [#allocation4], 0
    %s21 = scalar_lea.sflag [#allocation4], 1
    %22 = vsyncpa %s21, 0
    loop: start=0, step=1, limit=4
    $region2: #{tpu_custom_call.1} parent=1 // loop_pre_header
      _
    $region3: #{tpu_custom_call.1} parent=1 // loop_header
      %s24 = sphi 0, %s28
      %p25 = scmp.ge.s32.totalorder %s24, 4
      %s34 = sphi 0, %s36
      %s37 = sphi 0, %s34
      %s38 = sphi 0, %s37
      %s54 = sphi 0, %s38
      %s60 = sphi 0, %s62
      %s63 = sphi 0, %s60
      %s64 = sphi 0, %s63
      %s80 = sphi 0, %s64
      %s84 = sphi 0, %s84
      %s86 = sphi 0, %s84
      %s87 = sphi 0, %s86
      %s101 = sphi 0, %s87
      %s105 = sphi 0, %s105
      %s107 = sphi 0, %s105
      %s108 = sphi 0, %s107
      %s122 = sphi 0, %s108
      %s126 = sphi 0, %s126
      %s128 = sphi 0, %s126
      %s129 = sphi 0, %s128
      %s143 = sphi 0, %s129
      %s147 = sphi 0, %s147
      %s149 = sphi 0, %s147
      %s150 = sphi 0, %s149
      %s164 = sphi 0, %s150
      %s168 = sphi 0, %s168
      %s170 = sphi 0, %s168
      %s171 = sphi 0, %s170
      %s185 = sphi 0, %s171
      %s189 = sphi 0, %s189
      %s191 = sphi 0, %s189
      %s192 = sphi 0, %s191
      %s206 = sphi 0, %s192
      %s210 = sphi 0, %s210
      %s212 = sphi 0, %s210
      %s213 = sphi 0, %s212
      %s227 = sphi 0, %s213
      %s231 = sphi 0, %s231
      %s233 = sphi 0, %s231
      %s234 = sphi 0, %s233
      %s248 = sphi 0, %s234
      %s252 = sphi 0, %s252
      %s254 = sphi 0, %s252
      %s255 = sphi 0, %s254
      %s269 = sphi 0, %s255
      %s273 = sphi 0, %s273
      %s275 = sphi 0, %s273
      %s276 = sphi 0, %s275
      %s290 = sphi 0, %s276
      %s294 = sphi 0, %s294
      %s296 = sphi 0, %s294
      %s297 = sphi 0, %s296
      %s311 = sphi 0, %s297
      %s315 = sphi 0, %s315
      %s317 = sphi 0, %s315
      %s318 = sphi 0, %s317
      %s332 = sphi 0, %s318
      %s338 = sphi 0, %s340
      %s341 = sphi 0, %s338
      %s342 = sphi 0, %s341
      %s358 = sphi 0, %s342
    $region4: #{tpu_custom_call.1} parent=1 // loop_header_branch
      %27 = sbr.rel (%p25) target = $region8
    $region5: #{tpu_custom_call.1} parent=1 // loop_body
      %s29 = ssub.s32 %s24, 1
      %s30 = ssub.s32 %s24, 2
      %s31 = sadd.s32 %s24, 1
      %s32 = ssub.s32 %s24, %s31
      %p33 = scmp.eq.s32.totalorder %s32, 0
      %s35 = sadd.s32 %s34, 1
      %s36 = scalar_select %p33, %s34, %s35
      %p39 = pneg %p33
      %p40 = scmp.eq.s32.totalorder %s24, 1
      %p41 = por %p39, %p40
      %p42 = scmp.ne.s32.totalorder %s34, %s37
      %p43 = scmp.eq.s32.totalorder %s24, 0
      %p44 = por %p42, %p43
      %p45 = scmp.ne.s32.totalorder %s34, %s37
      %p46 = scmp.eq.s32.totalorder %s29, 1
      %p47 = por %p45, %p46
      %p48 = scmp.ne.s32.totalorder %s37, %s38
      %p49 = scmp.eq.s32.totalorder %s29, 0
      %p50 = por %p48, %p49
      %p51 = scmp.ne.s32.totalorder %s37, %s38
      %p52 = scmp.eq.s32.totalorder %s30, 1
      %p53 = por %p51, %p52
      %p55 = scmp.ne.s32.totalorder %s38, %s54
      %p56 = scmp.eq.s32.totalorder %s30, 0
      %p57 = por %p55, %p56
      %s58 = ssub.s32 %s24, %s31
      %p59 = scmp.eq.s32.totalorder %s58, 0
      %s61 = sadd.s32 %s60, 1
      %s62 = scalar_select %p59, %s60, %s61
      %p65 = pneg %p59
      %p66 = scmp.eq.s32.totalorder %s24, 1
      %p67 = por %p65, %p66
      %p68 = scmp.ne.s32.totalorder %s60, %s63
      %p69 = scmp.eq.s32.totalorder %s24, 0
      %p70 = por %p68, %p69
      %p71 = scmp.ne.s32.totalorder %s60, %s63
      %p72 = scmp.eq.s32.totalorder %s29, 1
      %p73 = por %p71, %p72
      %p74 = scmp.ne.s32.totalorder %s63, %s64
      %p75 = scmp.eq.s32.totalorder %s29, 0
      %p76 = por %p74, %p75
      %p77 = scmp.ne.s32.totalorder %s63, %s64
      %p78 = scmp.eq.s32.totalorder %s30, 1
      %p79 = por %p77, %p78
      %p81 = scmp.ne.s32.totalorder %s64, %s80
      %p82 = scmp.eq.s32.totalorder %s30, 0
      %p83 = por %p81, %p82
      %s85 = sadd.s32 %s84, 1
      %p88 = scmp.eq.s32.totalorder %s24, 1
      %p89 = scmp.ne.s32.totalorder %s84, %s86
      %p90 = scmp.eq.s32.totalorder %s24, 0
      %p91 = por %p89, %p90
      %p92 = scmp.ne.s32.totalorder %s84, %s86
      %p93 = scmp.eq.s32.totalorder %s29, 1
      %p94 = por %p92, %p93
      %p95 = scmp.ne.s32.totalorder %s86, %s87
      %p96 = scmp.eq.s32.totalorder %s29, 0
      %p97 = por %p95, %p96
      %p98 = scmp.ne.s32.totalorder %s86, %s87
      %p99 = scmp.eq.s32.totalorder %s30, 1
      %p100 = por %p98, %p99
      %p102 = scmp.ne.s32.totalorder %s87, %s101
      %p103 = scmp.eq.s32.totalorder %s30, 0
      %p104 = por %p102, %p103
      %s106 = sadd.s32 %s105, 1
      %p109 = scmp.eq.s32.totalorder %s24, 1
      %p110 = scmp.ne.s32.totalorder %s105, %s107
      %p111 = scmp.eq.s32.totalorder %s24, 0
      %p112 = por %p110, %p111
      %p113 = scmp.ne.s32.totalorder %s105, %s107
      %p114 = scmp.eq.s32.totalorder %s29, 1
      %p115 = por %p113, %p114
      %p116 = scmp.ne.s32.totalorder %s107, %s108
      %p117 = scmp.eq.s32.totalorder %s29, 0
      %p118 = por %p116, %p117
      %p119 = scmp.ne.s32.totalorder %s107, %s108
      %p120 = scmp.eq.s32.totalorder %s30, 1
      %p121 = por %p119, %p120
      %p123 = scmp.ne.s32.totalorder %s108, %s122
      %p124 = scmp.eq.s32.totalorder %s30, 0
      %p125 = por %p123, %p124
      %s127 = sadd.s32 %s126, 1
      %p130 = scmp.eq.s32.totalorder %s24, 1
      %p131 = scmp.ne.s32.totalorder %s126, %s128
      %p132 = scmp.eq.s32.totalorder %s24, 0
      %p133 = por %p131, %p132
      %p134 = scmp.ne.s32.totalorder %s126, %s128
      %p135 = scmp.eq.s32.totalorder %s29, 1
      %p136 = por %p134, %p135
      %p137 = scmp.ne.s32.totalorder %s128, %s129
      %p138 = scmp.eq.s32.totalorder %s29, 0
      %p139 = por %p137, %p138
      %p140 = scmp.ne.s32.totalorder %s128, %s129
      %p141 = scmp.eq.s32.totalorder %s30, 1
      %p142 = por %p140, %p141
      %p144 = scmp.ne.s32.totalorder %s129, %s143
      %p145 = scmp.eq.s32.totalorder %s30, 0
      %p146 = por %p144, %p145
      %s148 = sadd.s32 %s147, 1
      %p151 = scmp.eq.s32.totalorder %s24, 1
      %p152 = scmp.ne.s32.totalorder %s147, %s149
      %p153 = scmp.eq.s32.totalorder %s24, 0
      %p154 = por %p152, %p153
      %p155 = scmp.ne.s32.totalorder %s147, %s149
      %p156 = scmp.eq.s32.totalorder %s29, 1
      %p157 = por %p155, %p156
      %p158 = scmp.ne.s32.totalorder %s149, %s150
      %p159 = scmp.eq.s32.totalorder %s29, 0
      %p160 = por %p158, %p159
      %p161 = scmp.ne.s32.totalorder %s149, %s150
      %p162 = scmp.eq.s32.totalorder %s30, 1
      %p163 = por %p161, %p162
      %p165 = scmp.ne.s32.totalorder %s150, %s164
      %p166 = scmp.eq.s32.totalorder %s30, 0
      %p167 = por %p165, %p166
      %s169 = sadd.s32 %s168, 1
      %p172 = scmp.eq.s32.totalorder %s24, 1
      %p173 = scmp.ne.s32.totalorder %s168, %s170
      %p174 = scmp.eq.s32.totalorder %s24, 0
      %p175 = por %p173, %p174
      %p176 = scmp.ne.s32.totalorder %s168, %s170
      %p177 = scmp.eq.s32.totalorder %s29, 1
      %p178 = por %p176, %p177
      %p179 = scmp.ne.s32.totalorder %s170, %s171
      %p180 = scmp.eq.s32.totalorder %s29, 0
      %p181 = por %p179, %p180
      %p182 = scmp.ne.s32.totalorder %s170, %s171
      %p183 = scmp.eq.s32.totalorder %s30, 1
      %p184 = por %p182, %p183
      %p186 = scmp.ne.s32.totalorder %s171, %s185
      %p187 = scmp.eq.s32.totalorder %s30, 0
      %p188 = por %p186, %p187
      %s190 = sadd.s32 %s189, 1
      %p193 = scmp.eq.s32.totalorder %s24, 1
      %p194 = scmp.ne.s32.totalorder %s189, %s191
      %p195 = scmp.eq.s32.totalorder %s24, 0
      %p196 = por %p194, %p195
      %p197 = scmp.ne.s32.totalorder %s189, %s191
      %p198 = scmp.eq.s32.totalorder %s29, 1
      %p199 = por %p197, %p198
      %p200 = scmp.ne.s32.totalorder %s191, %s192
      %p201 = scmp.eq.s32.totalorder %s29, 0
      %p202 = por %p200, %p201
      %p203 = scmp.ne.s32.totalorder %s191, %s192
      %p204 = scmp.eq.s32.totalorder %s30, 1
      %p205 = por %p203, %p204
      %p207 = scmp.ne.s32.totalorder %s192, %s206
      %p208 = scmp.eq.s32.totalorder %s30, 0
      %p209 = por %p207, %p208
      %s211 = sadd.s32 %s210, 1
      %p214 = scmp.eq.s32.totalorder %s24, 1
      %p215 = scmp.ne.s32.totalorder %s210, %s212
      %p216 = scmp.eq.s32.totalorder %s24, 0
      %p217 = por %p215, %p216
      %p218 = scmp.ne.s32.totalorder %s210, %s212
      %p219 = scmp.eq.s32.totalorder %s29, 1
      %p220 = por %p218, %p219
      %p221 = scmp.ne.s32.totalorder %s212, %s213
      %p222 = scmp.eq.s32.totalorder %s29, 0
      %p223 = por %p221, %p222
      %p224 = scmp.ne.s32.totalorder %s212, %s213
      %p225 = scmp.eq.s32.totalorder %s30, 1
      %p226 = por %p224, %p225
      %p228 = scmp.ne.s32.totalorder %s213, %s227
      %p229 = scmp.eq.s32.totalorder %s30, 0
      %p230 = por %p228, %p229
      %s232 = sadd.s32 %s231, 1
      %p235 = scmp.eq.s32.totalorder %s24, 1
      %p236 = scmp.ne.s32.totalorder %s231, %s233
      %p237 = scmp.eq.s32.totalorder %s24, 0
      %p238 = por %p236, %p237
      %p239 = scmp.ne.s32.totalorder %s231, %s233
      %p240 = scmp.eq.s32.totalorder %s29, 1
      %p241 = por %p239, %p240
      %p242 = scmp.ne.s32.totalorder %s233, %s234
      %p243 = scmp.eq.s32.totalorder %s29, 0
      %p244 = por %p242, %p243
      %p245 = scmp.ne.s32.totalorder %s233, %s234
      %p246 = scmp.eq.s32.totalorder %s30, 1
      %p247 = por %p245, %p246
      %p249 = scmp.ne.s32.totalorder %s234, %s248
      %p250 = scmp.eq.s32.totalorder %s30, 0
      %p251 = por %p249, %p250
      %s253 = sadd.s32 %s252, 1
      %p256 = scmp.eq.s32.totalorder %s24, 1
      %p257 = scmp.ne.s32.totalorder %s252, %s254
      %p258 = scmp.eq.s32.totalorder %s24, 0
      %p259 = por %p257, %p258
      %p260 = scmp.ne.s32.totalorder %s252, %s254
      %p261 = scmp.eq.s32.totalorder %s29, 1
      %p262 = por %p260, %p261
      %p263 = scmp.ne.s32.totalorder %s254, %s255
      %p264 = scmp.eq.s32.totalorder %s29, 0
      %p265 = por %p263, %p264
      %p266 = scmp.ne.s32.totalorder %s254, %s255
      %p267 = scmp.eq.s32.totalorder %s30, 1
      %p268 = por %p266, %p267
      %p270 = scmp.ne.s32.totalorder %s255, %s269
      %p271 = scmp.eq.s32.totalorder %s30, 0
      %p272 = por %p270, %p271
      %s274 = sadd.s32 %s273, 1
      %p277 = scmp.eq.s32.totalorder %s24, 1
      %p278 = scmp.ne.s32.totalorder %s273, %s275
      %p279 = scmp.eq.s32.totalorder %s24, 0
      %p280 = por %p278, %p279
      %p281 = scmp.ne.s32.totalorder %s273, %s275
      %p282 = scmp.eq.s32.totalorder %s29, 1
      %p283 = por %p281, %p282
      %p284 = scmp.ne.s32.totalorder %s275, %s276
      %p285 = scmp.eq.s32.totalorder %s29, 0
      %p286 = por %p284, %p285
      %p287 = scmp.ne.s32.totalorder %s275, %s276
      %p288 = scmp.eq.s32.totalorder %s30, 1
      %p289 = por %p287, %p288
      %p291 = scmp.ne.s32.totalorder %s276, %s290
      %p292 = scmp.eq.s32.totalorder %s30, 0
      %p293 = por %p291, %p292
      %s295 = sadd.s32 %s294, 1
      %p298 = scmp.eq.s32.totalorder %s24, 1
      %p299 = scmp.ne.s32.totalorder %s294, %s296
      %p300 = scmp.eq.s32.totalorder %s24, 0
      %p301 = por %p299, %p300
      %p302 = scmp.ne.s32.totalorder %s294, %s296
      %p303 = scmp.eq.s32.totalorder %s29, 1
      %p304 = por %p302, %p303
      %p305 = scmp.ne.s32.totalorder %s296, %s297
      %p306 = scmp.eq.s32.totalorder %s29, 0
      %p307 = por %p305, %p306
      %p308 = scmp.ne.s32.totalorder %s296, %s297
      %p309 = scmp.eq.s32.totalorder %s30, 1
      %p310 = por %p308, %p309
      %p312 = scmp.ne.s32.totalorder %s297, %s311
      %p313 = scmp.eq.s32.totalorder %s30, 0
      %p314 = por %p312, %p313
      %s316 = sadd.s32 %s315, 1
      %p319 = scmp.eq.s32.totalorder %s24, 1
      %p320 = scmp.ne.s32.totalorder %s315, %s317
      %p321 = scmp.eq.s32.totalorder %s24, 0
      %p322 = por %p320, %p321
      %p323 = scmp.ne.s32.totalorder %s315, %s317
      %p324 = scmp.eq.s32.totalorder %s29, 1
      %p325 = por %p323, %p324
      %p326 = scmp.ne.s32.totalorder %s317, %s318
      %p327 = scmp.eq.s32.totalorder %s29, 0
      %p328 = por %p326, %p327
      %p329 = scmp.ne.s32.totalorder %s317, %s318
      %p330 = scmp.eq.s32.totalorder %s30, 1
      %p331 = por %p329, %p330
      %p333 = scmp.ne.s32.totalorder %s318, %s332
      %p334 = scmp.eq.s32.totalorder %s30, 0
      %p335 = por %p333, %p334
      %s336 = ssub.s32 %s24, %s31
      %p337 = scmp.eq.s32.totalorder %s336, 0
      %s339 = sadd.s32 %s338, 1
      %s340 = scalar_select %p337, %s338, %s339
      %p343 = pneg %p337
      %p344 = scmp.eq.s32.totalorder %s24, 1
      %p345 = por %p343, %p344
      %p346 = scmp.ne.s32.totalorder %s338, %s341
      %p347 = scmp.eq.s32.totalorder %s24, 0
      %p348 = por %p346, %p347
      %p349 = scmp.ne.s32.totalorder %s338, %s341
      %p350 = scmp.eq.s32.totalorder %s29, 1
      %p351 = por %p349, %p350
      %p352 = scmp.ne.s32.totalorder %s341, %s342
      %p353 = scmp.eq.s32.totalorder %s29, 0
      %p354 = por %p352, %p353
      %p355 = scmp.ne.s32.totalorder %s341, %s342
      %p356 = scmp.eq.s32.totalorder %s30, 1
      %p357 = por %p355, %p356
      %p359 = scmp.ne.s32.totalorder %s342, %s358
      %p360 = scmp.eq.s32.totalorder %s30, 0
      %p361 = por %p359, %p360
      %p362 = scmp.le.s32.totalorder 1, %s24
      %p363 = scmp.lt.s32.totalorder %s24, 3
      %p364 = pnand %p362, %p363
      %p365 = pneg %p364
      // Predicated region
      $region9: #{tpu_custom_call.1} parent=5 // pred_check
        _
      $region10: #{tpu_custom_call.1} parent=5 // pred_check_branch
        %367 = sbr.rel (%p364) target = $region12
      $region11: #{tpu_custom_call.1} parent=5 // pred_region
        %s368 = ssub.s32 %s24, 1
        // Predicated region
        $region13: #{tpu_custom_call.1} parent=11 // pred_check
          %p369 = pneg %p97
        $region14: #{tpu_custom_call.1} parent=11 // pred_check_branch
          %371 = sbr.rel (%p369) target = $region16
        $region15: #{tpu_custom_call.1} parent=11 // pred_region
          _
        $region16: #{tpu_custom_call.1} parent=11 // pred_fallthru
          _
        // Predicated region
        $region17: #{tpu_custom_call.1} parent=11 // pred_check
          %p372 = pneg %p118
        $region18: #{tpu_custom_call.1} parent=11 // pred_check_branch
          %374 = sbr.rel (%p372) target = $region20
        $region19: #{tpu_custom_call.1} parent=11 // pred_region
          _
        $region20: #{tpu_custom_call.1} parent=11 // pred_fallthru
          _
        // Predicated region
        $region21: #{tpu_custom_call.1} parent=11 // pred_check
          %p375 = pneg %p139
        $region22: #{tpu_custom_call.1} parent=11 // pred_check_branch
          %377 = sbr.rel (%p375) target = $region24
        $region23: #{tpu_custom_call.1} parent=11 // pred_region
          _
        $region24: #{tpu_custom_call.1} parent=11 // pred_fallthru
          _
        // Predicated region
        $region25: #{tpu_custom_call.1} parent=11 // pred_check
          %p378 = pneg %p160
        $region26: #{tpu_custom_call.1} parent=11 // pred_check_branch
          %380 = sbr.rel (%p378) target = $region28
        $region27: #{tpu_custom_call.1} parent=11 // pred_region
          _
        $region28: #{tpu_custom_call.1} parent=11 // pred_fallthru
          _
        // Predicated region
        $region29: #{tpu_custom_call.1} parent=11 // pred_check
          %p381 = pneg %p181
        $region30: #{tpu_custom_call.1} parent=11 // pred_check_branch
          %383 = sbr.rel (%p381) target = $region32
        $region31: #{tpu_custom_call.1} parent=11 // pred_region
          _
        $region32: #{tpu_custom_call.1} parent=11 // pred_fallthru
          _
        // Predicated region
        $region33: #{tpu_custom_call.1} parent=11 // pred_check
          %p384 = pneg %p202
        $region34: #{tpu_custom_call.1} parent=11 // pred_check_branch
          %386 = sbr.rel (%p384) target = $region36
        $region35: #{tpu_custom_call.1} parent=11 // pred_region
          %s388 = ssub.s32 256, 256
          %389 = vsyncadd [#allocation3], %s388
          %s390 = sshll.u32 [#allocation2], 4
          %s391 = int_to_ptr.vmem [resolvable:$true] %s390
          %396 = dma.hbm_to_vmem [thread:$0]  %s7, 256, %s391, [#allocation3], 64, 64, 4
        $region36: #{tpu_custom_call.1} parent=11 // pred_fallthru
          _
        // Predicated region
        $region37: #{tpu_custom_call.1} parent=11 // pred_check
          %p397 = pneg %p223
        $region38: #{tpu_custom_call.1} parent=11 // pred_check_branch
          %399 = sbr.rel (%p397) target = $region40
        $region39: #{tpu_custom_call.1} parent=11 // pred_region
          _
        $region40: #{tpu_custom_call.1} parent=11 // pred_fallthru
          _
        // Predicated region
        $region41: #{tpu_custom_call.1} parent=11 // pred_check
          %p400 = pneg %p244
        $region42: #{tpu_custom_call.1} parent=11 // pred_check_branch
          %402 = sbr.rel (%p400) target = $region44
        $region43: #{tpu_custom_call.1} parent=11 // pred_region
          _
        $region44: #{tpu_custom_call.1} parent=11 // pred_fallthru
          _
        // Predicated region
        $region45: #{tpu_custom_call.1} parent=11 // pred_check
          %p403 = pneg %p265
        $region46: #{tpu_custom_call.1} parent=11 // pred_check_branch
          %405 = sbr.rel (%p403) target = $region48
        $region47: #{tpu_custom_call.1} parent=11 // pred_region
          _
        $region48: #{tpu_custom_call.1} parent=11 // pred_fallthru
          _
        // Predicated region
        $region49: #{tpu_custom_call.1} parent=11 // pred_check
          %p406 = pneg %p286
        $region50: #{tpu_custom_call.1} parent=11 // pred_check_branch
          %408 = sbr.rel (%p406) target = $region52
        $region51: #{tpu_custom_call.1} parent=11 // pred_region
          _
        $region52: #{tpu_custom_call.1} parent=11 // pred_fallthru
          _
        // Predicated region
        $region53: #{tpu_custom_call.1} parent=11 // pred_check
          %p409 = pneg %p307
        $region54: #{tpu_custom_call.1} parent=11 // pred_check_branch
          %411 = sbr.rel (%p409) target = $region56
        $region55: #{tpu_custom_call.1} parent=11 // pred_region
          _
        $region56: #{tpu_custom_call.1} parent=11 // pred_fallthru
          _
        // Predicated region
        $region57: #{tpu_custom_call.1} parent=11 // pred_check
          %p412 = pneg %p328
        $region58: #{tpu_custom_call.1} parent=11 // pred_check_branch
          %414 = sbr.rel (%p412) target = $region60
        $region59: #{tpu_custom_call.1} parent=11 // pred_region
          _
        $region60: #{tpu_custom_call.1} parent=11 // pred_fallthru
          _
      $region12: #{tpu_custom_call.1} parent=5 // pred_fallthru
        _
      %p415 = scmp.lt.s32.totalorder %s24, 2
      // Predicated region
      $region61: #{tpu_custom_call.1} parent=5 // pred_check
        %p416 = pneg %p415
      $region62: #{tpu_custom_call.1} parent=5 // pred_check_branch
        %418 = sbr.rel (%p416) target = $region64
      $region63: #{tpu_custom_call.1} parent=5 // pred_region
        // Predicated region
        $region65: #{tpu_custom_call.1} parent=63 // pred_check
          %p419 = pneg %p44
        $region66: #{tpu_custom_call.1} parent=63 // pred_check_branch
          %421 = sbr.rel (%p419) target = $region68
        $region67: #{tpu_custom_call.1} parent=63 // pred_region
          %s422 = smul.u32 2, %s24
          %p423 = scmp.lt.s32.totalorder %s422, 3
          %s424 = scalar_select %p423, %s422, 3
          %s425 = smul.addr %s424, 4
          %s426 = scalar_lea.vmem %s0, %s425
          %s427 = smul.u32 2, %s24
        $region68: #{tpu_custom_call.1} parent=63 // pred_fallthru
          _
        // Predicated region
        $region69: #{tpu_custom_call.1} parent=63 // pred_check
          %p428 = pneg %p70
        $region70: #{tpu_custom_call.1} parent=63 // pred_check_branch
          %430 = sbr.rel (%p428) target = $region72
        $region71: #{tpu_custom_call.1} parent=63 // pred_region
          %s431 = smul.u32 2, %s24
          %p432 = scmp.lt.s32.totalorder %s431, 3
          %s433 = scalar_select %p432, %s431, 3
          %s434 = smul.addr %s433, 8
          %s435 = scalar_lea.vmem %s1, %s434
          %s436 = smul.u32 2, %s24
        $region72: #{tpu_custom_call.1} parent=63 // pred_fallthru
          _
      $region64: #{tpu_custom_call.1} parent=5 // pred_fallthru
        _
      %p437 = scmp.le.s32.totalorder 1, %s24
      %p438 = scmp.lt.s32.totalorder %s24, 3
      %p439 = pnand %p437, %p438
      %p440 = pneg %p439
      // Predicated region
      $region73: #{tpu_custom_call.1} parent=5 // pred_check
        _
      $region74: #{tpu_custom_call.1} parent=5 // pred_check_branch
        %442 = sbr.rel (%p439) target = $region76
      $region75: #{tpu_custom_call.1} parent=5 // pred_region
        %s443 = ssub.s32 %s24, 1
        // Predicated region
        $region77: #{tpu_custom_call.1} parent=75 // pred_check
          %p444 = pneg %p202
        $region78: #{tpu_custom_call.1} parent=75 // pred_check_branch
          %446 = sbr.rel (%p444) target = $region80
        $region79: #{tpu_custom_call.1} parent=75 // pred_region
          %447 = dma.done [#allocation3], 256
        $region80: #{tpu_custom_call.1} parent=75 // pred_fallthru
          _
        %s448 = smul.u32 2, %s29
        %p449 = scmp.lt.s32.totalorder %s448, 3
        %s450 = scalar_select %p449, %s448, 3
        %s451 = smul.addr %s450, 4
        %s452 = scalar_lea.vmem %s0, %s451
        %p453 = pneg %p50
        %p454 = pneg %p47
        %s455 = smul.u32 2, %s29
        %p456 = scmp.lt.s32.totalorder %s455, 3
        %s457 = scalar_select %p456, %s455, 3
        %s458 = smul.addr %s457, 8
        %s459 = scalar_lea.vmem %s1, %s458
        %p460 = pneg %p76
        %p461 = pneg %p73
        %p462 = pneg %p97
        %p463 = pneg %p94
        %p464 = pneg %p118
        %p465 = pneg %p115
        %p466 = pneg %p139
        %p467 = pneg %p136
        %p468 = pneg %p160
        %p469 = pneg %p157
        %p470 = pneg %p181
        %p471 = pneg %p178
        %p472 = pneg %p202
        %p473 = pneg %p199
        %p474 = pneg %p223
        %p475 = pneg %p220
        %p476 = pneg %p244
        %p477 = pneg %p241
        %p478 = pneg %p265
        %p479 = pneg %p262
        %p480 = pneg %p286
        %p481 = pneg %p283
        %p482 = pneg %p307
        %p483 = pneg %p304
        %p484 = pneg %p328
        %p485 = pneg %p325
        %p486 = pneg %p354
        %p487 = pneg %p351
        %s488 = sand.u32 %s341, 1
        %s489 = scalar_lea.sflag [#allocation4], %s488
        %s490 = sand.u32 %s341, 1
        %s491 = smul.addr %s490, 48
        %s492 = scalar_lea.vmem [#allocation5], %s491
        %s493 = smul.u32 2, %s29
        %p494 = scmp.lt.s32.totalorder %s493, 3
        %s495 = scalar_select %p494, %s493, 3
        %s496 = smul.addr %s495, 4
        %s497 = scalar_lea.vmem %s0, %s496
        %s498 = smul.u32 2, %s29
        %s499 = smul.u32 2, %s29
        %p500 = scmp.lt.s32.totalorder %s499, 3
        %s501 = scalar_select %p500, %s499, 3
        %s502 = smul.addr %s501, 8
        %s503 = scalar_lea.vmem %s1, %s502
        %s504 = smul.u32 2, %s29
        %s505 = smul.u32 2, %s29
        %v507 = vld [vmem:[%s497] sm:$0xf]
        %v508 = vld [vmem:[%s497 + $0x4] sm:$0xf]
        %v509 = vld [vmem:[%s2] sm:$0xf]
        %v510 = vld [vmem:[%s2 + $0x4] sm:$0xf]
        %v511 = vld [vmem:[%s2 + $0x8] sm:$0xf]
        %v512 = vld [vmem:[%s2 + $0xc] sm:$0xf]
        %v513 = vld [vmem:[%s2 + $0x10] sm:$0xf]
        %v514 = vld [vmem:[%s2 + $0x14] sm:$0xf]
        %v515 = vld [vmem:[%s2 + $0x18] sm:$0xf]
        %v516 = vld [vmem:[%s2 + $0x1c] sm:$0xf]
        %v517 = vld [vmem:[%s8] sm:$0x1]
        %v519 = vlaneseq
        %v520 = vshrl.u32 %v519, 7
        %v521 = vsub.s32 0, %v520
        %v522 = vrot.slane %v517, %v521
        %v526 = vunpack.c.l.b16 %v507
        %v527 = vunpack.c.l.b16 %v508
        %v528 = vpack.c.b16 %v527, %v526
        %v537 = vunpack.c.l.b16 %v509
        %v538 = vunpack.c.l.b16 %v510
        %v539 = vunpack.c.l.b16 %v511
        %v540 = vunpack.c.l.b16 %v512
        %v541 = vunpack.c.l.b16 %v513
        %v542 = vunpack.c.l.b16 %v514
        %v543 = vunpack.c.l.b16 %v515
        %v544 = vunpack.c.l.b16 %v516
        %v545 = vpack.c.b16 %v538, %v537
        %v546 = vpack.c.b16 %v540, %v539
        %v547 = vpack.c.b16 %v542, %v541
        %v548 = vpack.c.b16 %v544, %v543
        %vm553 = vcmask 523264
        %v555 = vsel %vm553, %v528, 0
        %557 = vmatprep.subr.bf16.mxu0 0
        %558 = vmatpush1.bf16.msra.mxu0 0
        %559 = vmatprep.subr.bf16.mxu0 0
        %560 = vmatpush1.bf16.msra.mxu0 0
        %561 = vmatprep.subr.bf16.mxu0 0
        %562 = vmatpush1.bf16.msra.mxu0 0
        %563 = vmatprep.subr.bf16.mxu0 0
        %564 = vmatpush1.bf16.msra.mxu0 0
        %565 = vmatprep.subr.bf16.mxu0 0
        %566 = vmatpush1.bf16.msra.mxu0 %v548
        %567 = vmatprep.subr.bf16.mxu0 0
        %568 = vmatpush1.bf16.msra.mxu0 %v547
        %569 = vmatprep.subr.bf16.mxu0 0
        %570 = vmatpush1.bf16.msra.mxu0 %v546
        %571 = vmatprep.subr.bf16.mxu0 0
        %572 = vmatpush1.bf16.msra.mxu0 %v545
        %573 = vmatprep.subr.bf16.mxu0 0
        %574 = vmatpush2.bf16.msra.mxu0 0
        %575 = vmatprep.subr.bf16.mxu0 0
        %576 = vmatpush2.bf16.msra.mxu0 0
        %577 = vmatprep.subr.bf16.mxu0 0
        %578 = vmatpush2.bf16.msra.mxu0 0
        %579 = vmatprep.subr.bf16.mxu0 0
        %580 = vmatpush2.bf16.msra.mxu0 0
        %581 = vmatprep.subr.bf16.mxu0 0
        %582 = vmatpush2.bf16.msra.mxu0 0
        %583 = vmatprep.subr.bf16.mxu0 0
        %584 = vmatpush2.bf16.msra.mxu0 0
        %585 = vmatprep.subr.bf16.mxu0 0
        %586 = vmatpush2.bf16.msra.mxu0 0
        %587 = vmatprep.subr.bf16.mxu0 0
        %588 = vmatpush2.bf16.msra.mxu0 0
        %589 = vmatprep.mubr.bf16.mxu0 0
        %590 = vmatmul.mubr.bf16.gmra.mxu0 %v555
        %v591 = vpop.f32.mrf.mxu0
        %v592 = vadd.f32 %v522, %v591
        %v593 = vpop.f32.mrf.mxu0
        %v594 = vpop.f32.mrf.mxu0
        %v595 = vadd.f32 %v522, %v594
        %v596 = vpop.f32.mrf.mxu0
        %597 = vdwg.mxu0
        %v598 = vmul.f32 %v592, 0.2
        %v599 = vmul.f32 %v595, 0.2
        %v600 = vmax.f32 %v592, %v598
        %v601 = vmax.f32 %v595, %v599
        %v602 = vpack.c.bf16 %v601, %v600
        %v603 = vld [vmem:[%s3] sm:$0xf]
        %v604 = vld [vmem:[%s3 + $0x4] sm:$0xf]
        %v605 = vld [vmem:[%s3 + $0x8] sm:$0xf]
        %v606 = vld [vmem:[%s3 + $0xc] sm:$0xf]
        %v607 = vld [vmem:[%s9] sm:$0x1]
        %v609 = vlaneseq
        %v610 = vshrl.u32 %v609, 7
        %v611 = vsub.s32 0, %v610
        %v612 = vrot.slane %v607, %v611
        %v618 = vunpack.c.l.b16 %v603
        %v619 = vunpack.c.l.b16 %v604
        %v620 = vunpack.c.l.b16 %v605
        %v621 = vunpack.c.l.b16 %v606
        %v622 = vpack.c.b16 %v619, %v618
        %v623 = vpack.c.b16 %v621, %v620
        %vm626 = vcmask 261120
        %v628 = vsel %vm626, %v602, 0
        %630 = vmatprep.subr.bf16.mxu0 0
        %631 = vmatpush1.bf16.msra.mxu0 0
        %632 = vmatprep.subr.bf16.mxu0 0
        %633 = vmatpush1.bf16.msra.mxu0 0
        %634 = vmatprep.subr.bf16.mxu0 0
        %635 = vmatpush1.bf16.msra.mxu0 0
        %636 = vmatprep.subr.bf16.mxu0 0
        %637 = vmatpush1.bf16.msra.mxu0 0
        %638 = vmatprep.subr.bf16.mxu0 0
        %639 = vmatpush1.bf16.msra.mxu0 0
        %640 = vmatprep.subr.bf16.mxu0 0
        %641 = vmatpush1.bf16.msra.mxu0 0
        %642 = vmatprep.subr.bf16.mxu0 0
        %643 = vmatpush1.bf16.msra.mxu0 %v623
        %644 = vmatprep.subr.bf16.mxu0 0
        %645 = vmatpush1.bf16.msra.mxu0 %v622
        %646 = vmatprep.subr.bf16.mxu0 0
        %647 = vmatpush2.bf16.msra.mxu0 0
        %648 = vmatprep.subr.bf16.mxu0 0
        %649 = vmatpush2.bf16.msra.mxu0 0
        %650 = vmatprep.subr.bf16.mxu0 0
        %651 = vmatpush2.bf16.msra.mxu0 0
        %652 = vmatprep.subr.bf16.mxu0 0
        %653 = vmatpush2.bf16.msra.mxu0 0
        %654 = vmatprep.subr.bf16.mxu0 0
        %655 = vmatpush2.bf16.msra.mxu0 0
        %656 = vmatprep.subr.bf16.mxu0 0
        %657 = vmatpush2.bf16.msra.mxu0 0
        %658 = vmatprep.subr.bf16.mxu0 0
        %659 = vmatpush2.bf16.msra.mxu0 0
        %660 = vmatprep.subr.bf16.mxu0 0
        %661 = vmatpush2.bf16.msra.mxu0 0
        %662 = vmatprep.mubr.bf16.mxu0 0
        %663 = vmatmul.mubr.bf16.gmra.mxu0 %v628
        %v664 = vpop.f32.mrf.mxu0
        %v665 = vadd.f32 %v612, %v664
        %v666 = vpop.f32.mrf.mxu0
        %v667 = vpop.f32.mrf.mxu0
        %v668 = vadd.f32 %v612, %v667
        %v669 = vpop.f32.mrf.mxu0
        %670 = vdwg.mxu0
        %v671 = vmul.f32 %v665, 0.2
        %v672 = vmul.f32 %v668, 0.2
        %v673 = vmax.f32 %v665, %v671
        %v674 = vmax.f32 %v668, %v672
        %v675 = vpack.c.bf16 %v674, %v673
        %v676 = vld [vmem:[%s4] sm:$0xff]
        %v677 = vld [vmem:[%s4 + $0x8] sm:$0xff]
        %v678 = vld [vmem:[%s4 + $0x10] sm:$0xff]
        %v679 = vld [vmem:[%s4 + $0x18] sm:$0xff]
        %v680 = vld [vmem:[%s10] sm:$0x3]
        %v682 = vlaneseq
        %v683 = vshrl.u32 %v682, 7
        %v684 = vsub.s32 0, %v683
        %v685 = vrot.slane %v680, %v684
        %v686 = vlaneseq
        %v687 = vshrl.u32 %v686, 7
        %v688 = vsub.s32 1, %v687
        %v689 = vrot.slane %v680, %v688
        %v696 = vunpack.c.l.b16 %v676
        %v697 = vunpack.c.h.b16 %v676
        %v698 = vunpack.c.l.b16 %v677
        %v699 = vunpack.c.h.b16 %v677
        %v700 = vunpack.c.l.b16 %v678
        %v701 = vunpack.c.h.b16 %v678
        %v702 = vunpack.c.l.b16 %v679
        %v703 = vunpack.c.h.b16 %v679
        %v704 = vpack.c.b16 %v698, %v696
        %v705 = vpack.c.b16 %v699, %v697
        %v706 = vpack.c.b16 %v702, %v700
        %v707 = vpack.c.b16 %v703, %v701
        %v713 = vsel %vm626, %v675, 0
        %715 = vmatprep.subr.bf16.mxu0 0
        %716 = vmatpush1.bf16.msra.mxu0 0
        %717 = vmatprep.subr.bf16.mxu0 0
        %718 = vmatpush1.bf16.msra.mxu0 0
        %719 = vmatprep.subr.bf16.mxu0 0
        %720 = vmatpush1.bf16.msra.mxu0 0
        %721 = vmatprep.subr.bf16.mxu0 0
        %722 = vmatpush1.bf16.msra.mxu0 0
        %723 = vmatprep.subr.bf16.mxu0 0
        %724 = vmatpush1.bf16.msra.mxu0 0
        %725 = vmatprep.subr.bf16.mxu0 0
        %726 = vmatpush1.bf16.msra.mxu0 0
        %727 = vmatprep.subr.bf16.mxu0 %v707
        %728 = vmatpush1.bf16.msra.mxu0 %v706
        %729 = vmatprep.subr.bf16.mxu0 %v705
        %730 = vmatpush1.bf16.msra.mxu0 %v704
        %731 = vmatprep.subr.bf16.mxu0 0
        %732 = vmatpush2.bf16.msra.mxu0 0
        %733 = vmatprep.subr.bf16.mxu0 0
        %734 = vmatpush2.bf16.msra.mxu0 0
        %735 = vmatprep.subr.bf16.mxu0 0
        %736 = vmatpush2.bf16.msra.mxu0 0
        %737 = vmatprep.subr.bf16.mxu0 0
        %738 = vmatpush2.bf16.msra.mxu0 0
        %739 = vmatprep.subr.bf16.mxu0 0
        %740 = vmatpush2.bf16.msra.mxu0 0
        %741 = vmatprep.subr.bf16.mxu0 0
        %742 = vmatpush2.bf16.msra.mxu0 0
        %743 = vmatprep.subr.bf16.mxu0 0
        %744 = vmatpush2.bf16.msra.mxu0 0
        %745 = vmatprep.subr.bf16.mxu0 0
        %746 = vmatpush2.bf16.msra.mxu0 0
        %747 = vmatprep.mubr.bf16.mxu0 0
        %748 = vmatmul.mubr.bf16.gmra.mxu0 %v713
        %v749 = vpop.f32.mrf.mxu0
        %v750 = vadd.f32 %v685, %v749
        %v751 = vpop.f32.mrf.mxu0
        %v752 = vadd.f32 %v689, %v751
        %v753 = vpop.f32.mrf.mxu0
        %v754 = vadd.f32 %v685, %v753
        %v755 = vpop.f32.mrf.mxu0
        %v756 = vadd.f32 %v689, %v755
        %757 = vdwg.mxu0
        %v758 = vmul.f32 %v752, 0.5
        %v759 = vmul.f32 %v756, 0.5
        %v760 = vmul.f32 %v758, 1.442695
        %v761 = vpow.pop %v760
        %v762 = vmul.f32 %v759, 1.442695
        %v763 = vpow.pop %v762
        %v764 = vld [vmem:[%s503] sm:$0xff]
        %v765 = vld [vmem:[%s503 + $0x8] sm:$0xff]
        %v766 = vmul.f32 %v761, %v764
        %v767 = vmul.f32 %v763, %v765
        %v768 = vadd.f32 %v750, %v766
        %v769 = vadd.f32 %v754, %v767
        %v770 = vpack.c.bf16 %v769, %v768
        %v771 = vld [vmem:[%s5] sm:$0xf]
        %v772 = vld [vmem:[%s5 + $0x4] sm:$0xf]
        %v773 = vld [vmem:[%s5 + $0x8] sm:$0xf]
        %v774 = vld [vmem:[%s5 + $0xc] sm:$0xf]
        %v775 = vld [vmem:[%s5 + $0x10] sm:$0xf]
        %v776 = vld [vmem:[%s5 + $0x14] sm:$0xf]
        %v777 = vld [vmem:[%s5 + $0x18] sm:$0xf]
        %v778 = vld [vmem:[%s5 + $0x1c] sm:$0xf]
        %v779 = vld [vmem:[%s5 + $0x20] sm:$0xf]
        %v780 = vld [vmem:[%s5 + $0x24] sm:$0xf]
        %v781 = vld [vmem:[%s5 + $0x28] sm:$0xf]
        %v782 = vld [vmem:[%s5 + $0x2c] sm:$0xf]
        %v783 = vld [vmem:[%s5 + $0x30] sm:$0xf]
        %v784 = vld [vmem:[%s5 + $0x34] sm:$0xf]
        %v785 = vld [vmem:[%s5 + $0x38] sm:$0xf]
        %v786 = vld [vmem:[%s5 + $0x3c] sm:$0xf]
        %v787 = vld [vmem:[%s11] sm:$0x1]
        %v789 = vlaneseq
        %v790 = vshrl.u32 %v789, 7
        %v791 = vsub.s32 0, %v790
        %v792 = vrot.slane %v787, %v791
        %v810 = vunpack.c.l.b16 %v771
        %v811 = vunpack.c.l.b16 %v772
        %v812 = vunpack.c.l.b16 %v773
        %v813 = vunpack.c.l.b16 %v774
        %v814 = vunpack.c.l.b16 %v775
        %v815 = vunpack.c.l.b16 %v776
        %v816 = vunpack.c.l.b16 %v777
        %v817 = vunpack.c.l.b16 %v778
        %v818 = vunpack.c.l.b16 %v779
        %v819 = vunpack.c.l.b16 %v780
        %v820 = vunpack.c.l.b16 %v781
        %v821 = vunpack.c.l.b16 %v782
        %v822 = vunpack.c.l.b16 %v783
        %v823 = vunpack.c.l.b16 %v784
        %v824 = vunpack.c.l.b16 %v785
        %v825 = vunpack.c.l.b16 %v786
        %v826 = vpack.c.b16 %v811, %v810
        %v827 = vpack.c.b16 %v813, %v812
        %v828 = vpack.c.b16 %v815, %v814
        %v829 = vpack.c.b16 %v817, %v816
        %v830 = vpack.c.b16 %v819, %v818
        %v831 = vpack.c.b16 %v821, %v820
        %v832 = vpack.c.b16 %v823, %v822
        %v833 = vpack.c.b16 %v825, %v824
        %842 = vmatprep.subr.bf16.mxu0 0
        %843 = vmatpush1.bf16.msra.mxu0 %v833
        %844 = vmatprep.subr.bf16.mxu0 0
        %845 = vmatpush1.bf16.msra.mxu0 %v832
        %846 = vmatprep.subr.bf16.mxu0 0
        %847 = vmatpush1.bf16.msra.mxu0 %v831
        %848 = vmatprep.subr.bf16.mxu0 0
        %849 = vmatpush1.bf16.msra.mxu0 %v830
        %850 = vmatprep.subr.bf16.mxu0 0
        %851 = vmatpush1.bf16.msra.mxu0 %v829
        %852 = vmatprep.subr.bf16.mxu0 0
        %853 = vmatpush1.bf16.msra.mxu0 %v828
        %854 = vmatprep.subr.bf16.mxu0 0
        %855 = vmatpush1.bf16.msra.mxu0 %v827
        %856 = vmatprep.subr.bf16.mxu0 0
        %857 = vmatpush1.bf16.msra.mxu0 %v826
        %858 = vmatprep.subr.bf16.mxu0 0
        %859 = vmatpush2.bf16.msra.mxu0 0
        %860 = vmatprep.subr.bf16.mxu0 0
        %861 = vmatpush2.bf16.msra.mxu0 0
        %862 = vmatprep.subr.bf16.mxu0 0
        %863 = vmatpush2.bf16.msra.mxu0 0
        %864 = vmatprep.subr.bf16.mxu0 0
        %865 = vmatpush2.bf16.msra.mxu0 0
        %866 = vmatprep.subr.bf16.mxu0 0
        %867 = vmatpush2.bf16.msra.mxu0 0
        %868 = vmatprep.subr.bf16.mxu0 0
        %869 = vmatpush2.bf16.msra.mxu0 0
        %870 = vmatprep.subr.bf16.mxu0 0
        %871 = vmatpush2.bf16.msra.mxu0 0
        %872 = vmatprep.subr.bf16.mxu0 0
        %873 = vmatpush2.bf16.msra.mxu0 0
        %874 = vmatprep.mubr.bf16.mxu0 0
        %875 = vmatmul.mubr.bf16.gmra.mxu0 %v770
        %v876 = vpop.f32.mrf.mxu0
        %v877 = vadd.f32 %v792, %v876
        %v878 = vpop.f32.mrf.mxu0
        %v879 = vpop.f32.mrf.mxu0
        %v880 = vadd.f32 %v792, %v879
        %v881 = vpop.f32.mrf.mxu0
        %882 = vdwg.mxu0
        %v883 = vmul.f32 %v877, 0.2
        %v884 = vmul.f32 %v880, 0.2
        %v885 = vmax.f32 %v877, %v883
        %v886 = vmax.f32 %v880, %v884
        %v887 = vpack.c.bf16 %v886, %v885
        %v888 = vld [vmem:[%s6] sm:$0xf]
        %v889 = vld [vmem:[%s6 + $0x4] sm:$0xf]
        %v890 = vld [vmem:[%s6 + $0x8] sm:$0xf]
        %v891 = vld [vmem:[%s6 + $0xc] sm:$0xf]
        %v892 = vld [vmem:[%s12] sm:$0x1]
        %v894 = vlaneseq
        %v895 = vshrl.u32 %v894, 7
        %v896 = vsub.s32 0, %v895
        %v897 = vrot.slane %v892, %v896
        %v903 = vunpack.c.l.b16 %v888
        %v904 = vunpack.c.l.b16 %v889
        %v905 = vunpack.c.l.b16 %v890
        %v906 = vunpack.c.l.b16 %v891
        %v907 = vpack.c.b16 %v904, %v903
        %v908 = vpack.c.b16 %v906, %v905
        %v912 = vsel %vm626, %v887, 0
        %914 = vmatprep.subr.bf16.mxu0 0
        %915 = vmatpush1.bf16.msra.mxu0 0
        %916 = vmatprep.subr.bf16.mxu0 0
        %917 = vmatpush1.bf16.msra.mxu0 0
        %918 = vmatprep.subr.bf16.mxu0 0
        %919 = vmatpush1.bf16.msra.mxu0 0
        %920 = vmatprep.subr.bf16.mxu0 0
        %921 = vmatpush1.bf16.msra.mxu0 0
        %922 = vmatprep.subr.bf16.mxu0 0
        %923 = vmatpush1.bf16.msra.mxu0 0
        %924 = vmatprep.subr.bf16.mxu0 0
        %925 = vmatpush1.bf16.msra.mxu0 0
        %926 = vmatprep.subr.bf16.mxu0 0
        %927 = vmatpush1.bf16.msra.mxu0 %v908
        %928 = vmatprep.subr.bf16.mxu0 0
        %929 = vmatpush1.bf16.msra.mxu0 %v907
        %930 = vmatprep.subr.bf16.mxu0 0
        %931 = vmatpush2.bf16.msra.mxu0 0
        %932 = vmatprep.subr.bf16.mxu0 0
        %933 = vmatpush2.bf16.msra.mxu0 0
        %934 = vmatprep.subr.bf16.mxu0 0
        %935 = vmatpush2.bf16.msra.mxu0 0
        %936 = vmatprep.subr.bf16.mxu0 0
        %937 = vmatpush2.bf16.msra.mxu0 0
        %938 = vmatprep.subr.bf16.mxu0 0
        %939 = vmatpush2.bf16.msra.mxu0 0
        %940 = vmatprep.subr.bf16.mxu0 0
        %941 = vmatpush2.bf16.msra.mxu0 0
        %942 = vmatprep.subr.bf16.mxu0 0
        %943 = vmatpush2.bf16.msra.mxu0 0
        %944 = vmatprep.subr.bf16.mxu0 0
        %945 = vmatpush2.bf16.msra.mxu0 0
        %946 = vmatprep.mubr.bf16.mxu0 0
        %947 = vmatmul.mubr.bf16.gmra.mxu0 %v912
        %v948 = vpop.f32.mrf.mxu0
        %v949 = vadd.f32 %v897, %v948
        %v950 = vpop.f32.mrf.mxu0
        %v951 = vpop.f32.mrf.mxu0
        %v952 = vadd.f32 %v897, %v951
        %v953 = vpop.f32.mrf.mxu0
        %954 = vdwg.mxu0
        %v955 = vmul.f32 %v949, 0.2
        %v956 = vmul.f32 %v952, 0.2
        %v957 = vmax.f32 %v949, %v955
        %v958 = vmax.f32 %v952, %v956
        %v959 = vpack.c.bf16 %v958, %v957
        %v960 = vld [vmem:[#allocation2] sm:$0xf]
        %v961 = vld [vmem:[#allocation2 + $0x4] sm:$0xf]
        %v962 = vld [vmem:[#allocation2 + $0x8] sm:$0xf]
        %v963 = vld [vmem:[#allocation2 + $0xc] sm:$0xf]
        %v964 = vld [vmem:[%s13] sm:$0x1]
        %v966 = vlaneseq
        %v967 = vshrl.u32 %v966, 7
        %v968 = vsub.s32 0, %v967
        %v969 = vrot.slane %v964, %v968
        %v975 = vunpack.c.l.b16 %v960
        %v976 = vunpack.c.l.b16 %v961
        %v977 = vunpack.c.l.b16 %v962
        %v978 = vunpack.c.l.b16 %v963
        %v979 = vpack.c.b16 %v976, %v975
        %v980 = vpack.c.b16 %v978, %v977
        %v984 = vsel %vm626, %v959, 0
        %986 = vmatprep.subr.bf16.mxu0 0
        %987 = vmatpush1.bf16.msra.mxu0 0
        %988 = vmatprep.subr.bf16.mxu0 0
        %989 = vmatpush1.bf16.msra.mxu0 0
        %990 = vmatprep.subr.bf16.mxu0 0
        %991 = vmatpush1.bf16.msra.mxu0 0
        %992 = vmatprep.subr.bf16.mxu0 0
        %993 = vmatpush1.bf16.msra.mxu0 0
        %994 = vmatprep.subr.bf16.mxu0 0
        %995 = vmatpush1.bf16.msra.mxu0 0
        %996 = vmatprep.subr.bf16.mxu0 0
        %997 = vmatpush1.bf16.msra.mxu0 0
        %998 = vmatprep.subr.bf16.mxu0 0
        %999 = vmatpush1.bf16.msra.mxu0 %v980
        %1000 = vmatprep.subr.bf16.mxu0 0
        %1001 = vmatpush1.bf16.msra.mxu0 %v979
        %1002 = vmatprep.subr.bf16.mxu0 0
        %1003 = vmatpush2.bf16.msra.mxu0 0
        %1004 = vmatprep.subr.bf16.mxu0 0
        %1005 = vmatpush2.bf16.msra.mxu0 0
        %1006 = vmatprep.subr.bf16.mxu0 0
        %1007 = vmatpush2.bf16.msra.mxu0 0
        %1008 = vmatprep.subr.bf16.mxu0 0
        %1009 = vmatpush2.bf16.msra.mxu0 0
        %1010 = vmatprep.subr.bf16.mxu0 0
        %1011 = vmatpush2.bf16.msra.mxu0 0
        %1012 = vmatprep.subr.bf16.mxu0 0
        %1013 = vmatpush2.bf16.msra.mxu0 0
        %1014 = vmatprep.subr.bf16.mxu0 0
        %1015 = vmatpush2.bf16.msra.mxu0 0
        %1016 = vmatprep.subr.bf16.mxu0 0
        %1017 = vmatpush2.bf16.msra.mxu0 0
        %1018 = vmatprep.mubr.bf16.mxu0 0
        %1019 = vmatmul.mubr.bf16.gmra.mxu0 %v984
        %v1020 = vpop.f32.mrf.mxu0
        %v1021 = vadd.f32 %v969, %v1020
        %v1022 = vpop.f32.mrf.mxu0
        %v1023 = vpop.f32.mrf.mxu0
        %v1024 = vadd.f32 %v969, %v1023
        %v1025 = vpop.f32.mrf.mxu0
        %1026 = vdwg.mxu0
        %v1027 = vsub.f32 0.0, %v1021
        %v1028 = vsub.f32 0.0, %v1024
        %v1029 = vmul.f32 %v1027, 1.442695
        %v1030 = vpow.pop %v1029
        %v1031 = vmul.f32 %v1028, 1.442695
        %v1032 = vpow.pop %v1031
        %v1033 = vadd.f32 %v1030, 1.0
        %v1034 = vadd.f32 %v1032, 1.0
        %v1035 = vrcp.pop %v1033
        %v1036 = vrcp.pop %v1034
        %v1037 = vmax.f32 %v1035, 0.0
        %v1038 = vmax.f32 %v1036, 0.0
        %v1039 = vmin.f32 %v1037, 1.0
        %v1040 = vmin.f32 %v1038, 1.0
        %1041 = vst [vmem:[%s492] sm:$0xff] %v1039
        %1042 = vst [vmem:[%s492 + $0x18] sm:$0xff] %v1040
        %1043 = vst [vmem:[%s492 + $0x8] sm:$0xff] %v750
        %1044 = vst [vmem:[%s492 + $0x10] sm:$0xff] %v752
        %1045 = vst [vmem:[%s492 + $0x20] sm:$0xff] %v754
        %1046 = vst [vmem:[%s492 + $0x28] sm:$0xff] %v756
        %s1047 = sand.u32 %s341, 1
        %s1048 = scalar_lea.sflag [#allocation4], %s1047
        %s1049 = sand.u32 %s341, 1
        %s1050 = smul.addr %s1049, 48
        %s1051 = scalar_lea.vmem [#allocation5], %s1050
        // Predicated region
        $region81: #{tpu_custom_call.1} parent=75 // pred_check
          %p1052 = pneg %p351
        $region82: #{tpu_custom_call.1} parent=75 // pred_check_branch
          %1054 = sbr.rel (%p1052) target = $region84
        $region83: #{tpu_custom_call.1} parent=75 // pred_region
          %s1055 = smul.u32 2, %s29
          %s1057 = ssub.s32 768, 768
          %1058 = vsyncadd %s1048, %s1057
          %s1059 = smul.addr %s1055, 3
          %s1060 = smul.addr %s1059, 128
          %s1061 = scalar_lea.hbm %s14, %s1060
          %s1062 = sshll.u32 %s1051, 4
          %s1063 = int_to_ptr.vmem [resolvable:$true] %s1062
          %1068 = dma.vmem_to_hbm [thread:$0]  %s1063, 768, %s1061, %s1048, 384, 384, 24
        $region84: #{tpu_custom_call.1} parent=75 // pred_fallthru
          _
      $region76: #{tpu_custom_call.1} parent=5 // pred_fallthru
        _
      %p1069 = scmp.le.s32.totalorder 2, %s24
      // Predicated region
      $region85: #{tpu_custom_call.1} parent=5 // pred_check
        %p1070 = pneg %p1069
      $region86: #{tpu_custom_call.1} parent=5 // pred_check_branch
        %1072 = sbr.rel (%p1070) target = $region88
      $region87: #{tpu_custom_call.1} parent=5 // pred_region
        %s1073 = ssub.s32 %s24, 2
        // Predicated region
        $region89: #{tpu_custom_call.1} parent=87 // pred_check
          %p1074 = pneg %p357
        $region90: #{tpu_custom_call.1} parent=87 // pred_check_branch
          %1076 = sbr.rel (%p1074) target = $region92
        $region91: #{tpu_custom_call.1} parent=87 // pred_region
          %s1077 = sand.u32 %s342, 1
          %s1078 = scalar_lea.sflag [#allocation4], %s1077
          %s1079 = sand.u32 %s342, 1
          %s1080 = smul.addr %s1079, 48
          %s1081 = scalar_lea.vmem [#allocation5], %s1080
          %1082 = dma.done %s1078, 768
        $region92: #{tpu_custom_call.1} parent=87 // pred_fallthru
          _
      $region88: #{tpu_custom_call.1} parent=5 // pred_fallthru
        _
    $region6: #{tpu_custom_call.1} parent=1 // loop_footer
      %s28 = sadd.s32 1, %s24
    $region7: #{tpu_custom_call.1} parent=1 // loop_footer_branch
      %23 = sbr.rel target = $region3
    $region8: #{tpu_custom_call.1} parent=1 // loop_exit
      _
    %1083 = vsyncpa [#allocation3], 1
    %s1084 = scalar_lea.sflag [#allocation3], 1
    %1085 = vsyncpa %s1084, 1
    %1086 = vsyncpa [#allocation4], 1
    %s1087 = scalar_lea.sflag [#allocation4], 1
    %1088 = vsyncpa %s1087, 1

// kernel: tpu_custom_call.1
$region0: #{tpu_custom_call.1}
  #allocation0 [shape = 'u32[]', space=smem, size = 0x4, offset = 0x4, fixed_abs, tag = 'smem constant byte address 0x4 - core index']
  #allocation1 [shape = 'u32[144,128]{1,0:T(1,128)}', space=vmem, size = 0x12000, scoped, tag = 'internal scratch']
  %s0 = inlined_call_operand.vmem [shape: bf16[32,64], index: 0, kind: input, shape index: {}]
  %s1 = inlined_call_operand.vmem [shape: f32[32,128], index: 1, kind: input, shape index: {}]
  %s2 = inlined_call_operand.vmem [shape: bf16[64,32], index: 2, kind: input, shape index: {}]
  %s3 = inlined_call_operand.vmem [shape: bf16[32,32], index: 3, kind: input, shape index: {}]
  %s4 = inlined_call_operand.vmem [shape: bf16[32,256], index: 4, kind: input, shape index: {}]
  %s5 = inlined_call_operand.vmem [shape: bf16[128,32], index: 5, kind: input, shape index: {}]
  %s6 = inlined_call_operand.vmem [shape: bf16[32,32], index: 6, kind: input, shape index: {}]
  %s7 = inlined_call_operand.hbm [shape: bf16[32,128], index: 7, kind: input, shape index: {}]
  %s8 = inlined_call_operand.vmem [shape: f32[1,32], index: 8, kind: input, shape index: {}]
  %s9 = inlined_call_operand.vmem [shape: f32[1,32], index: 9, kind: input, shape index: {}]
  %s10 = inlined_call_operand.vmem [shape: f32[1,256], index: 10, kind: input, shape index: {}]
  %s11 = inlined_call_operand.vmem [shape: f32[1,32], index: 11, kind: input, shape index: {}]
  %s12 = inlined_call_operand.vmem [shape: f32[1,32], index: 12, kind: input, shape index: {}]
  %s13 = inlined_call_operand.vmem [shape: f32[1,128], index: 13, kind: input, shape index: {}]
  %s14 = inlined_call_operand.hbm [shape: f32[32,384], index: 14, kind: output, shape index: {}]
  %s15 = sld [smem:[#allocation0]]
  $region93: #{tpu_custom_call.1} parent=0
    _
  %s17 = ssub.s32 1, %s15
  %s18 = scalar_select 0, %s17, %s15
  $region1: #{tpu_custom_call.1} parent=0
    #allocation2 [shape = 'u8[8192]{0}', space=vmem, size = 0x2000, scoped, tag = 'input window, operand 7, single buffered']
    #allocation3 [shape = 's32[2]{0}', space=sflag, size = 0x8, scoped, tag = 'scoped memory for tpu_custom_call.1']
    #allocation4 [shape = 's32[2]{0}', space=sflag, size = 0x8, scoped, tag = 'scoped memory for tpu_custom_call.1']
    #allocation5 [shape = 'u8[49152]{0}', space=vmem, size = 0xc000, scoped, tag = 'output window, operand 0']
    %19 = vsyncpa [#allocation3], 0
    %20 = vsyncpa [#allocation4], 0
    %s21 = scalar_lea.sflag [#allocation4], 1
    %22 = vsyncpa %s21, 0
    loop: start=0, step=1, limit=4
    $region2: #{tpu_custom_call.1} parent=1 // loop_pre_header
      _
    $region3: #{tpu_custom_call.1} parent=1 // loop_header
      %s24 = sphi 0, %s28
      %p25 = scmp.ge.s32.totalorder %s24, 4
      %s34 = sphi 0, %s36
      %s37 = sphi 0, %s34
      %s38 = sphi 0, %s37
      %s54 = sphi 0, %s38
      %s60 = sphi 0, %s62
      %s63 = sphi 0, %s60
      %s64 = sphi 0, %s63
      %s80 = sphi 0, %s64
      %s84 = sphi 0, %s84
      %s86 = sphi 0, %s84
      %s87 = sphi 0, %s86
      %s101 = sphi 0, %s87
      %s105 = sphi 0, %s105
      %s107 = sphi 0, %s105
      %s108 = sphi 0, %s107
      %s122 = sphi 0, %s108
      %s126 = sphi 0, %s126
      %s128 = sphi 0, %s126
      %s129 = sphi 0, %s128
      %s143 = sphi 0, %s129
      %s147 = sphi 0, %s147
      %s149 = sphi 0, %s147
      %s150 = sphi 0, %s149
      %s164 = sphi 0, %s150
      %s168 = sphi 0, %s168
      %s170 = sphi 0, %s168
      %s171 = sphi 0, %s170
      %s185 = sphi 0, %s171
      %s189 = sphi 0, %s189
      %s191 = sphi 0, %s189
      %s192 = sphi 0, %s191
      %s206 = sphi 0, %s192
      %s210 = sphi 0, %s210
      %s212 = sphi 0, %s210
      %s213 = sphi 0, %s212
      %s227 = sphi 0, %s213
      %s231 = sphi 0, %s231
      %s233 = sphi 0, %s231
      %s234 = sphi 0, %s233
      %s248 = sphi 0, %s234
      %s252 = sphi 0, %s252
      %s254 = sphi 0, %s252
      %s255 = sphi 0, %s254
      %s269 = sphi 0, %s255
      %s273 = sphi 0, %s273
      %s275 = sphi 0, %s273
      %s276 = sphi 0, %s275
      %s290 = sphi 0, %s276
      %s294 = sphi 0, %s294
      %s296 = sphi 0, %s294
      %s297 = sphi 0, %s296
      %s311 = sphi 0, %s297
      %s315 = sphi 0, %s315
      %s317 = sphi 0, %s315
      %s318 = sphi 0, %s317
      %s332 = sphi 0, %s318
      %s338 = sphi 0, %s340
      %s341 = sphi 0, %s338
      %s342 = sphi 0, %s341
      %s358 = sphi 0, %s342
    $region4: #{tpu_custom_call.1} parent=1 // loop_header_branch
      %27 = sbr.rel (%p25) target = $region8
    $region5: #{tpu_custom_call.1} parent=1 // loop_body
      %s29 = ssub.s32 %s24, 1
      %s30 = ssub.s32 %s24, 2
      %s31 = sadd.s32 %s24, 1
      %s32 = ssub.s32 %s24, %s31
      %p33 = scmp.eq.s32.totalorder %s32, 0
      %s35 = sadd.s32 %s34, 1
      %s36 = scalar_select %p33, %s34, %s35
      %p39 = pneg %p33
      %p40 = scmp.eq.s32.totalorder %s24, 1
      %p41 = por %p39, %p40
      %p42 = scmp.ne.s32.totalorder %s34, %s37
      %p43 = scmp.eq.s32.totalorder %s24, 0
      %p44 = por %p42, %p43
      %p45 = scmp.ne.s32.totalorder %s34, %s37
      %p46 = scmp.eq.s32.totalorder %s29, 1
      %p47 = por %p45, %p46
      %p48 = scmp.ne.s32.totalorder %s37, %s38
      %p49 = scmp.eq.s32.totalorder %s29, 0
      %p50 = por %p48, %p49
      %p51 = scmp.ne.s32.totalorder %s37, %s38
      %p52 = scmp.eq.s32.totalorder %s30, 1
      %p53 = por %p51, %p52
      %p55 = scmp.ne.s32.totalorder %s38, %s54
      %p56 = scmp.eq.s32.totalorder %s30, 0
      %p57 = por %p55, %p56
      %s58 = ssub.s32 %s24, %s31
      %p59 = scmp.eq.s32.totalorder %s58, 0
      %s61 = sadd.s32 %s60, 1
      %s62 = scalar_select %p59, %s60, %s61
      %p65 = pneg %p59
      %p66 = scmp.eq.s32.totalorder %s24, 1
      %p67 = por %p65, %p66
      %p68 = scmp.ne.s32.totalorder %s60, %s63
      %p69 = scmp.eq.s32.totalorder %s24, 0
      %p70 = por %p68, %p69
      %p71 = scmp.ne.s32.totalorder %s60, %s63
      %p72 = scmp.eq.s32.totalorder %s29, 1
      %p73 = por %p71, %p72
      %p74 = scmp.ne.s32.totalorder %s63, %s64
      %p75 = scmp.eq.s32.totalorder %s29, 0
      %p76 = por %p74, %p75
      %p77 = scmp.ne.s32.totalorder %s63, %s64
      %p78 = scmp.eq.s32.totalorder %s30, 1
      %p79 = por %p77, %p78
      %p81 = scmp.ne.s32.totalorder %s64, %s80
      %p82 = scmp.eq.s32.totalorder %s30, 0
      %p83 = por %p81, %p82
      %s85 = sadd.s32 %s84, 1
      %p88 = scmp.eq.s32.totalorder %s24, 1
      %p89 = scmp.ne.s32.totalorder %s84, %s86
      %p90 = scmp.eq.s32.totalorder %s24, 0
      %p91 = por %p89, %p90
      %p92 = scmp.ne.s32.totalorder %s84, %s86
      %p93 = scmp.eq.s32.totalorder %s29, 1
      %p94 = por %p92, %p93
      %p95 = scmp.ne.s32.totalorder %s86, %s87
      %p96 = scmp.eq.s32.totalorder %s29, 0
      %p97 = por %p95, %p96
      %p98 = scmp.ne.s32.totalorder %s86, %s87
      %p99 = scmp.eq.s32.totalorder %s30, 1
      %p100 = por %p98, %p99
      %p102 = scmp.ne.s32.totalorder %s87, %s101
      %p103 = scmp.eq.s32.totalorder %s30, 0
      %p104 = por %p102, %p103
      %s106 = sadd.s32 %s105, 1
      %p109 = scmp.eq.s32.totalorder %s24, 1
      %p110 = scmp.ne.s32.totalorder %s105, %s107
      %p111 = scmp.eq.s32.totalorder %s24, 0
      %p112 = por %p110, %p111
      %p113 = scmp.ne.s32.totalorder %s105, %s107
      %p114 = scmp.eq.s32.totalorder %s29, 1
      %p115 = por %p113, %p114
      %p116 = scmp.ne.s32.totalorder %s107, %s108
      %p117 = scmp.eq.s32.totalorder %s29, 0
      %p118 = por %p116, %p117
      %p119 = scmp.ne.s32.totalorder %s107, %s108
      %p120 = scmp.eq.s32.totalorder %s30, 1
      %p121 = por %p119, %p120
      %p123 = scmp.ne.s32.totalorder %s108, %s122
      %p124 = scmp.eq.s32.totalorder %s30, 0
      %p125 = por %p123, %p124
      %s127 = sadd.s32 %s126, 1
      %p130 = scmp.eq.s32.totalorder %s24, 1
      %p131 = scmp.ne.s32.totalorder %s126, %s128
      %p132 = scmp.eq.s32.totalorder %s24, 0
      %p133 = por %p131, %p132
      %p134 = scmp.ne.s32.totalorder %s126, %s128
      %p135 = scmp.eq.s32.totalorder %s29, 1
      %p136 = por %p134, %p135
      %p137 = scmp.ne.s32.totalorder %s128, %s129
      %p138 = scmp.eq.s32.totalorder %s29, 0
      %p139 = por %p137, %p138
      %p140 = scmp.ne.s32.totalorder %s128, %s129
      %p141 = scmp.eq.s32.totalorder %s30, 1
      %p142 = por %p140, %p141
      %p144 = scmp.ne.s32.totalorder %s129, %s143
      %p145 = scmp.eq.s32.totalorder %s30, 0
      %p146 = por %p144, %p145
      %s148 = sadd.s32 %s147, 1
      %p151 = scmp.eq.s32.totalorder %s24, 1
      %p152 = scmp.ne.s32.totalorder %s147, %s149
      %p153 = scmp.eq.s32.totalorder %s24, 0
      %p154 = por %p152, %p153
      %p155 = scmp.ne.s32.totalorder %s147, %s149
      %p156 = scmp.eq.s32.totalorder %s29, 1
      %p157 = por %p155, %p156
      %p158 = scmp.ne.s32.totalorder %s149, %s150
      %p159 = scmp.eq.s32.totalorder %s29, 0
      %p160 = por %p158, %p159
      %p161 = scmp.ne.s32.totalorder %s149, %s150
      %p162 = scmp.eq.s32.totalorder %s30, 1
      %p163 = por %p161, %p162
      %p165 = scmp.ne.s32.totalorder %s150, %s164
      %p166 = scmp.eq.s32.totalorder %s30, 0
      %p167 = por %p165, %p166
      %s169 = sadd.s32 %s168, 1
      %p172 = scmp.eq.s32.totalorder %s24, 1
      %p173 = scmp.ne.s32.totalorder %s168, %s170
      %p174 = scmp.eq.s32.totalorder %s24, 0
      %p175 = por %p173, %p174
      %p176 = scmp.ne.s32.totalorder %s168, %s170
      %p177 = scmp.eq.s32.totalorder %s29, 1
      %p178 = por %p176, %p177
      %p179 = scmp.ne.s32.totalorder %s170, %s171
      %p180 = scmp.eq.s32.totalorder %s29, 0
      %p181 = por %p179, %p180
      %p182 = scmp.ne.s32.totalorder %s170, %s171
      %p183 = scmp.eq.s32.totalorder %s30, 1
      %p184 = por %p182, %p183
      %p186 = scmp.ne.s32.totalorder %s171, %s185
      %p187 = scmp.eq.s32.totalorder %s30, 0
      %p188 = por %p186, %p187
      %s190 = sadd.s32 %s189, 1
      %p193 = scmp.eq.s32.totalorder %s24, 1
      %p194 = scmp.ne.s32.totalorder %s189, %s191
      %p195 = scmp.eq.s32.totalorder %s24, 0
      %p196 = por %p194, %p195
      %p197 = scmp.ne.s32.totalorder %s189, %s191
      %p198 = scmp.eq.s32.totalorder %s29, 1
      %p199 = por %p197, %p198
      %p200 = scmp.ne.s32.totalorder %s191, %s192
      %p201 = scmp.eq.s32.totalorder %s29, 0
      %p202 = por %p200, %p201
      %p203 = scmp.ne.s32.totalorder %s191, %s192
      %p204 = scmp.eq.s32.totalorder %s30, 1
      %p205 = por %p203, %p204
      %p207 = scmp.ne.s32.totalorder %s192, %s206
      %p208 = scmp.eq.s32.totalorder %s30, 0
      %p209 = por %p207, %p208
      %s211 = sadd.s32 %s210, 1
      %p214 = scmp.eq.s32.totalorder %s24, 1
      %p215 = scmp.ne.s32.totalorder %s210, %s212
      %p216 = scmp.eq.s32.totalorder %s24, 0
      %p217 = por %p215, %p216
      %p218 = scmp.ne.s32.totalorder %s210, %s212
      %p219 = scmp.eq.s32.totalorder %s29, 1
      %p220 = por %p218, %p219
      %p221 = scmp.ne.s32.totalorder %s212, %s213
      %p222 = scmp.eq.s32.totalorder %s29, 0
      %p223 = por %p221, %p222
      %p224 = scmp.ne.s32.totalorder %s212, %s213
      %p225 = scmp.eq.s32.totalorder %s30, 1
      %p226 = por %p224, %p225
      %p228 = scmp.ne.s32.totalorder %s213, %s227
      %p229 = scmp.eq.s32.totalorder %s30, 0
      %p230 = por %p228, %p229
      %s232 = sadd.s32 %s231, 1
      %p235 = scmp.eq.s32.totalorder %s24, 1
      %p236 = scmp.ne.s32.totalorder %s231, %s233
      %p237 = scmp.eq.s32.totalorder %s24, 0
      %p238 = por %p236, %p237
      %p239 = scmp.ne.s32.totalorder %s231, %s233
      %p240 = scmp.eq.s32.totalorder %s29, 1
      %p241 = por %p239, %p240
      %p242 = scmp.ne.s32.totalorder %s233, %s234
      %p243 = scmp.eq.s32.totalorder %s29, 0
      %p244 = por %p242, %p243
      %p245 = scmp.ne.s32.totalorder %s233, %s234
      %p246 = scmp.eq.s32.totalorder %s30, 1
      %p247 = por %p245, %p246
      %p249 = scmp.ne.s32.totalorder %s234, %s248
      %p250 = scmp.eq.s32.totalorder %s30, 0
      %p251 = por %p249, %p250
      %s253 = sadd.s32 %s252, 1
      %p256 = scmp.eq.s32.totalorder %s24, 1
      %p257 = scmp.ne.s32.totalorder %s252, %s254
      %p258 = scmp.eq.s32.totalorder %s24, 0
      %p259 = por %p257, %p258
      %p260 = scmp.ne.s32.totalorder %s252, %s254
      %p261 = scmp.eq.s32.totalorder %s29, 1
      %p262 = por %p260, %p261
      %p263 = scmp.ne.s32.totalorder %s254, %s255
      %p264 = scmp.eq.s32.totalorder %s29, 0
      %p265 = por %p263, %p264
      %p266 = scmp.ne.s32.totalorder %s254, %s255
      %p267 = scmp.eq.s32.totalorder %s30, 1
      %p268 = por %p266, %p267
      %p270 = scmp.ne.s32.totalorder %s255, %s269
      %p271 = scmp.eq.s32.totalorder %s30, 0
      %p272 = por %p270, %p271
      %s274 = sadd.s32 %s273, 1
      %p277 = scmp.eq.s32.totalorder %s24, 1
      %p278 = scmp.ne.s32.totalorder %s273, %s275
      %p279 = scmp.eq.s32.totalorder %s24, 0
      %p280 = por %p278, %p279
      %p281 = scmp.ne.s32.totalorder %s273, %s275
      %p282 = scmp.eq.s32.totalorder %s29, 1
      %p283 = por %p281, %p282
      %p284 = scmp.ne.s32.totalorder %s275, %s276
      %p285 = scmp.eq.s32.totalorder %s29, 0
      %p286 = por %p284, %p285
      %p287 = scmp.ne.s32.totalorder %s275, %s276
      %p288 = scmp.eq.s32.totalorder %s30, 1
      %p289 = por %p287, %p288
      %p291 = scmp.ne.s32.totalorder %s276, %s290
      %p292 = scmp.eq.s32.totalorder %s30, 0
      %p293 = por %p291, %p292
      %s295 = sadd.s32 %s294, 1
      %p298 = scmp.eq.s32.totalorder %s24, 1
      %p299 = scmp.ne.s32.totalorder %s294, %s296
      %p300 = scmp.eq.s32.totalorder %s24, 0
      %p301 = por %p299, %p300
      %p302 = scmp.ne.s32.totalorder %s294, %s296
      %p303 = scmp.eq.s32.totalorder %s29, 1
      %p304 = por %p302, %p303
      %p305 = scmp.ne.s32.totalorder %s296, %s297
      %p306 = scmp.eq.s32.totalorder %s29, 0
      %p307 = por %p305, %p306
      %p308 = scmp.ne.s32.totalorder %s296, %s297
      %p309 = scmp.eq.s32.totalorder %s30, 1
      %p310 = por %p308, %p309
      %p312 = scmp.ne.s32.totalorder %s297, %s311
      %p313 = scmp.eq.s32.totalorder %s30, 0
      %p314 = por %p312, %p313
      %s316 = sadd.s32 %s315, 1
      %p319 = scmp.eq.s32.totalorder %s24, 1
      %p320 = scmp.ne.s32.totalorder %s315, %s317
      %p321 = scmp.eq.s32.totalorder %s24, 0
      %p322 = por %p320, %p321
      %p323 = scmp.ne.s32.totalorder %s315, %s317
      %p324 = scmp.eq.s32.totalorder %s29, 1
      %p325 = por %p323, %p324
      %p326 = scmp.ne.s32.totalorder %s317, %s318
      %p327 = scmp.eq.s32.totalorder %s29, 0
      %p328 = por %p326, %p327
      %p329 = scmp.ne.s32.totalorder %s317, %s318
      %p330 = scmp.eq.s32.totalorder %s30, 1
      %p331 = por %p329, %p330
      %p333 = scmp.ne.s32.totalorder %s318, %s332
      %p334 = scmp.eq.s32.totalorder %s30, 0
      %p335 = por %p333, %p334
      %s336 = ssub.s32 %s24, %s31
      %p337 = scmp.eq.s32.totalorder %s336, 0
      %s339 = sadd.s32 %s338, 1
      %s340 = scalar_select %p337, %s338, %s339
      %p343 = pneg %p337
      %p344 = scmp.eq.s32.totalorder %s24, 1
      %p345 = por %p343, %p344
      %p346 = scmp.ne.s32.totalorder %s338, %s341
      %p347 = scmp.eq.s32.totalorder %s24, 0
      %p348 = por %p346, %p347
      %p349 = scmp.ne.s32.totalorder %s338, %s341
      %p350 = scmp.eq.s32.totalorder %s29, 1
      %p351 = por %p349, %p350
      %p352 = scmp.ne.s32.totalorder %s341, %s342
      %p353 = scmp.eq.s32.totalorder %s29, 0
      %p354 = por %p352, %p353
      %p355 = scmp.ne.s32.totalorder %s341, %s342
      %p356 = scmp.eq.s32.totalorder %s30, 1
      %p357 = por %p355, %p356
      %p359 = scmp.ne.s32.totalorder %s342, %s358
      %p360 = scmp.eq.s32.totalorder %s30, 0
      %p361 = por %p359, %p360
      %p362 = scmp.le.s32.totalorder 1, %s24
      %p363 = scmp.lt.s32.totalorder %s24, 3
      %p364 = pnand %p362, %p363
      %p365 = pneg %p364
      // Predicated region
      $region9: #{tpu_custom_call.1} parent=5 // pred_check
        _
      $region10: #{tpu_custom_call.1} parent=5 // pred_check_branch
        %367 = sbr.rel (%p364) target = $region12
      $region11: #{tpu_custom_call.1} parent=5 // pred_region
        %s368 = ssub.s32 %s24, 1
        // Predicated region
        $region13: #{tpu_custom_call.1} parent=11 // pred_check
          %p369 = pneg %p97
        $region14: #{tpu_custom_call.1} parent=11 // pred_check_branch
          %371 = sbr.rel (%p369) target = $region16
        $region15: #{tpu_custom_call.1} parent=11 // pred_region
          _
        $region16: #{tpu_custom_call.1} parent=11 // pred_fallthru
          _
        // Predicated region
        $region17: #{tpu_custom_call.1} parent=11 // pred_check
          %p372 = pneg %p118
        $region18: #{tpu_custom_call.1} parent=11 // pred_check_branch
          %374 = sbr.rel (%p372) target = $region20
        $region19: #{tpu_custom_call.1} parent=11 // pred_region
          _
        $region20: #{tpu_custom_call.1} parent=11 // pred_fallthru
          _
        // Predicated region
        $region21: #{tpu_custom_call.1} parent=11 // pred_check
          %p375 = pneg %p139
        $region22: #{tpu_custom_call.1} parent=11 // pred_check_branch
          %377 = sbr.rel (%p375) target = $region24
        $region23: #{tpu_custom_call.1} parent=11 // pred_region
          _
        $region24: #{tpu_custom_call.1} parent=11 // pred_fallthru
          _
        // Predicated region
        $region25: #{tpu_custom_call.1} parent=11 // pred_check
          %p378 = pneg %p160
        $region26: #{tpu_custom_call.1} parent=11 // pred_check_branch
          %380 = sbr.rel (%p378) target = $region28
        $region27: #{tpu_custom_call.1} parent=11 // pred_region
          _
        $region28: #{tpu_custom_call.1} parent=11 // pred_fallthru
          _
        // Predicated region
        $region29: #{tpu_custom_call.1} parent=11 // pred_check
          %p381 = pneg %p181
        $region30: #{tpu_custom_call.1} parent=11 // pred_check_branch
          %383 = sbr.rel (%p381) target = $region32
        $region31: #{tpu_custom_call.1} parent=11 // pred_region
          _
        $region32: #{tpu_custom_call.1} parent=11 // pred_fallthru
          _
        // Predicated region
        $region33: #{tpu_custom_call.1} parent=11 // pred_check
          %p384 = pneg %p202
        $region34: #{tpu_custom_call.1} parent=11 // pred_check_branch
          %386 = sbr.rel (%p384) target = $region36
        $region35: #{tpu_custom_call.1} parent=11 // pred_region
          %s388 = ssub.s32 256, 256
          %389 = vsyncadd [#allocation3], %s388
          %s390 = sshll.u32 [#allocation2], 4
          %s391 = int_to_ptr.vmem [resolvable:$true] %s390
          %396 = dma.hbm_to_vmem [thread:$0]  %s7, 256, %s391, [#allocation3], 64, 64, 4
        $region36: #{tpu_custom_call.1} parent=11 // pred_fallthru
          _
        // Predicated region
        $region37: #{tpu_custom_call.1} parent=11 // pred_check
          %p397 = pneg %p223
        $region38: #{tpu_custom_call.1} parent=11 // pred_check_branch
          %399 = sbr.rel (%p397) target = $region40
        $region39: #{tpu_custom_call.1} parent=11 // pred_region
          _
        $region40: #{tpu_custom_call.1} parent=11 // pred_fallthru
          _
        // Predicated region
        $region41: #{tpu_custom_call.1} parent=11 // pred_check
          %p400 = pneg %p244
        $region42: #{tpu_custom_call.1} parent=11 // pred_check_branch
          %402 = sbr.rel (%p400) target = $region44
        $region43: #{tpu_custom_call.1} parent=11 // pred_region
          _
        $region44: #{tpu_custom_call.1} parent=11 // pred_fallthru
          _
        // Predicated region
        $region45: #{tpu_custom_call.1} parent=11 // pred_check
          %p403 = pneg %p265
        $region46: #{tpu_custom_call.1} parent=11 // pred_check_branch
          %405 = sbr.rel (%p403) target = $region48
        $region47: #{tpu_custom_call.1} parent=11 // pred_region
          _
        $region48: #{tpu_custom_call.1} parent=11 // pred_fallthru
          _
        // Predicated region
        $region49: #{tpu_custom_call.1} parent=11 // pred_check
          %p406 = pneg %p286
        $region50: #{tpu_custom_call.1} parent=11 // pred_check_branch
          %408 = sbr.rel (%p406) target = $region52
        $region51: #{tpu_custom_call.1} parent=11 // pred_region
          _
        $region52: #{tpu_custom_call.1} parent=11 // pred_fallthru
          _
        // Predicated region
        $region53: #{tpu_custom_call.1} parent=11 // pred_check
          %p409 = pneg %p307
        $region54: #{tpu_custom_call.1} parent=11 // pred_check_branch
          %411 = sbr.rel (%p409) target = $region56
        $region55: #{tpu_custom_call.1} parent=11 // pred_region
          _
        $region56: #{tpu_custom_call.1} parent=11 // pred_fallthru
          _
        // Predicated region
        $region57: #{tpu_custom_call.1} parent=11 // pred_check
          %p412 = pneg %p328
        $region58: #{tpu_custom_call.1} parent=11 // pred_check_branch
          %414 = sbr.rel (%p412) target = $region60
        $region59: #{tpu_custom_call.1} parent=11 // pred_region
          _
        $region60: #{tpu_custom_call.1} parent=11 // pred_fallthru
          _
      $region12: #{tpu_custom_call.1} parent=5 // pred_fallthru
        _
      %p415 = scmp.lt.s32.totalorder %s24, 2
      // Predicated region
      $region61: #{tpu_custom_call.1} parent=5 // pred_check
        %p416 = pneg %p415
      $region62: #{tpu_custom_call.1} parent=5 // pred_check_branch
        %418 = sbr.rel (%p416) target = $region64
      $region63: #{tpu_custom_call.1} parent=5 // pred_region
        // Predicated region
        $region65: #{tpu_custom_call.1} parent=63 // pred_check
          %p419 = pneg %p44
        $region66: #{tpu_custom_call.1} parent=63 // pred_check_branch
          %421 = sbr.rel (%p419) target = $region68
        $region67: #{tpu_custom_call.1} parent=63 // pred_region
          %s422 = smul.u32 2, %s24
          %p423 = scmp.lt.s32.totalorder %s422, 3
          %s424 = scalar_select %p423, %s422, 3
          %s425 = smul.addr %s424, 4
          %s426 = scalar_lea.vmem %s0, %s425
          %s427 = smul.u32 2, %s24
        $region68: #{tpu_custom_call.1} parent=63 // pred_fallthru
          _
        // Predicated region
        $region69: #{tpu_custom_call.1} parent=63 // pred_check
          %p428 = pneg %p70
        $region70: #{tpu_custom_call.1} parent=63 // pred_check_branch
          %430 = sbr.rel (%p428) target = $region72
        $region71: #{tpu_custom_call.1} parent=63 // pred_region
          %s431 = smul.u32 2, %s24
          %p432 = scmp.lt.s32.totalorder %s431, 3
          %s433 = scalar_select %p432, %s431, 3
          %s434 = smul.addr %s433, 8
          %s435 = scalar_lea.vmem %s1, %s434
          %s436 = smul.u32 2, %s24
        $region72: #{tpu_custom_call.1} parent=63 // pred_fallthru
          _
      $region64: #{tpu_custom_call.1} parent=5 // pred_fallthru
        _
      %p437 = scmp.le.s32.totalorder 1, %s24
      %p438 = scmp.lt.s32.totalorder %s24, 3
      %p439 = pnand %p437, %p438
      %p440 = pneg %p439
      // Predicated region
      $region73: #{tpu_custom_call.1} parent=5 // pred_check
        _
      $region74: #{tpu_custom_call.1} parent=5 // pred_check_branch
        %442 = sbr.rel (%p439) target = $region76
      $region75: #{tpu_custom_call.1} parent=5 // pred_region
        %s443 = ssub.s32 %s24, 1
        // Predicated region
        $region77: #{tpu_custom_call.1} parent=75 // pred_check
          %p444 = pneg %p202
        $region78: #{tpu_custom_call.1} parent=75 // pred_check_branch
          %446 = sbr.rel (%p444) target = $region80
        $region79: #{tpu_custom_call.1} parent=75 // pred_region
          %447 = dma.done [#allocation3], 256
        $region80: #{tpu_custom_call.1} parent=75 // pred_fallthru
          _
        %s448 = smul.u32 2, %s29
        %p449 = scmp.lt.s32.totalorder %s448, 3
        %s450 = scalar_select %p449, %s448, 3
        %s451 = smul.addr %s450, 4
        %s452 = scalar_lea.vmem %s0, %s451
        %p453 = pneg %p50
        %p454 = pneg %p47
        %s455 = smul.u32 2, %s29
        %p456 = scmp.lt.s32.totalorder %s455, 3
        %s457 = scalar_select %p456, %s455, 3
        %s458 = smul.addr %s457, 8
        %s459 = scalar_lea.vmem %s1, %s458
        %p460 = pneg %p76
        %p461 = pneg %p73
        %p462 = pneg %p97
        %p463 = pneg %p94
        %p464 = pneg %p118
        %p465 = pneg %p115
        %p466 = pneg %p139
        %p467 = pneg %p136
        %p468 = pneg %p160
        %p469 = pneg %p157
        %p470 = pneg %p181
        %p471 = pneg %p178
        %p472 = pneg %p202
        %p473 = pneg %p199
        %p474 = pneg %p223
        %p475 = pneg %p220
        %p476 = pneg %p244
        %p477 = pneg %p241
        %p478 = pneg %p265
        %p479 = pneg %p262
        %p480 = pneg %p286
        %p481 = pneg %p283
        %p482 = pneg %p307
        %p483 = pneg %p304
        %p484 = pneg %p328
        %p485 = pneg %p325
        %p486 = pneg %p354
        %p487 = pneg %p351
        %s488 = sand.u32 %s341, 1
        %s489 = scalar_lea.sflag [#allocation4], %s488
        %s490 = sand.u32 %s341, 1
        %s491 = smul.addr %s490, 48
        %s492 = scalar_lea.vmem [#allocation5], %s491
        %s493 = smul.u32 2, %s29
        %p494 = scmp.lt.s32.totalorder %s493, 3
        %s495 = scalar_select %p494, %s493, 3
        %s496 = smul.addr %s495, 4
        %s497 = scalar_lea.vmem %s0, %s496
        %s498 = smul.u32 2, %s29
        %s499 = smul.u32 2, %s29
        %p500 = scmp.lt.s32.totalorder %s499, 3
        %s501 = scalar_select %p500, %s499, 3
        %s502 = smul.addr %s501, 8
        %s503 = scalar_lea.vmem %s1, %s502
        %s504 = smul.u32 2, %s29
        %s505 = smul.u32 2, %s29
        %v507 = vld [vmem:[%s497] sm:$0xf]
        %v508 = vld [vmem:[%s497 + $0x4] sm:$0xf]
        %v509 = vld [vmem:[%s2] sm:$0xf]
        %v510 = vld [vmem:[%s2 + $0x4] sm:$0xf]
        %v511 = vld [vmem:[%s2 + $0x8] sm:$0xf]
        %v512 = vld [vmem:[%s2 + $0xc] sm:$0xf]
        %v513 = vld [vmem:[%s2 + $0x10] sm:$0xf]
        %v514 = vld [vmem:[%s2 + $0x14] sm:$0xf]
        %v515 = vld [vmem:[%s2 + $0x18] sm:$0xf]
        %v516 = vld [vmem:[%s2 + $0x1c] sm:$0xf]
        %v517 = vld [vmem:[%s8] sm:$0x1]
        %v519 = vlaneseq
        %v520 = vshrl.u32 %v519, 7
        %v521 = vsub.s32 0, %v520
        %v522 = vrot.slane %v517, %v521
        %v526 = vunpack.c.l.b16 %v507
        %v527 = vunpack.c.l.b16 %v508
        %v528 = vpack.c.b16 %v527, %v526
        %v537 = vunpack.c.l.b16 %v509
        %v538 = vunpack.c.l.b16 %v510
        %v539 = vunpack.c.l.b16 %v511
        %v540 = vunpack.c.l.b16 %v512
        %v541 = vunpack.c.l.b16 %v513
        %v542 = vunpack.c.l.b16 %v514
        %v543 = vunpack.c.l.b16 %v515
        %v544 = vunpack.c.l.b16 %v516
        %v545 = vpack.c.b16 %v538, %v537
        %v546 = vpack.c.b16 %v540, %v539
        %v547 = vpack.c.b16 %v542, %v541
        %v548 = vpack.c.b16 %v544, %v543
        %vm553 = vcmask 523264
        %v555 = vsel %vm553, %v528, 0
        %557 = vmatprep.subr.bf16.mxu0 0
        %558 = vmatpush1.bf16.msra.mxu0 0
        %559 = vmatprep.subr.bf16.mxu0 0
        %560 = vmatpush1.bf16.msra.mxu0 0
        %561 = vmatprep.subr.bf16.mxu0 0
        %562 = vmatpush1.bf16.msra.mxu0 0
        %563 = vmatprep.subr.bf16.mxu0 0
        %564 = vmatpush1.bf16.msra.mxu0 0
        %565 = vmatprep.subr.bf16.mxu0 0
        %566 = vmatpush1.bf16.msra.mxu0 %v548
        %567 = vmatprep.subr.bf16.mxu0 0
        %568 = vmatpush1.bf16.msra.mxu0 %v547
        %569 = vmatprep.subr.bf16.mxu0 0
        %570 = vmatpush1.bf16.msra.mxu0 %v546
        %571 = vmatprep.subr.bf16.mxu0 0
        %572 = vmatpush1.bf16.msra.mxu0 %v545
        %573 = vmatprep.subr.bf16.mxu0 0
        %574 = vmatpush2.bf16.msra.mxu0 0
        %575 = vmatprep.subr.bf16.mxu0 0
        %576 = vmatpush2.bf16.msra.mxu0 0
        %577 = vmatprep.subr.bf16.mxu0 0
        %578 = vmatpush2.bf16.msra.mxu0 0
        %579 = vmatprep.subr.bf16.mxu0 0
        %580 = vmatpush2.bf16.msra.mxu0 0
        %581 = vmatprep.subr.bf16.mxu0 0
        %582 = vmatpush2.bf16.msra.mxu0 0
        %583 = vmatprep.subr.bf16.mxu0 0
        %584 = vmatpush2.bf16.msra.mxu0 0
        %585 = vmatprep.subr.bf16.mxu0 0
        %586 = vmatpush2.bf16.msra.mxu0 0
        %587 = vmatprep.subr.bf16.mxu0 0
        %588 = vmatpush2.bf16.msra.mxu0 0
        %589 = vmatprep.mubr.bf16.mxu0 0
        %590 = vmatmul.mubr.bf16.gmra.mxu0 %v555
        %v591 = vpop.f32.mrf.mxu0
        %v592 = vadd.f32 %v522, %v591
        %v593 = vpop.f32.mrf.mxu0
        %v594 = vpop.f32.mrf.mxu0
        %v595 = vadd.f32 %v522, %v594
        %v596 = vpop.f32.mrf.mxu0
        %597 = vdwg.mxu0
        %v598 = vmul.f32 %v592, 0.2
        %v599 = vmul.f32 %v595, 0.2
        %v600 = vmax.f32 %v592, %v598
        %v601 = vmax.f32 %v595, %v599
        %v602 = vpack.c.bf16 %v601, %v600
        %v603 = vld [vmem:[%s3] sm:$0xf]
        %v604 = vld [vmem:[%s3 + $0x4] sm:$0xf]
        %v605 = vld [vmem:[%s3 + $0x8] sm:$0xf]
        %v606 = vld [vmem:[%s3 + $0xc] sm:$0xf]
        %v607 = vld [vmem:[%s9] sm:$0x1]
        %v609 = vlaneseq
        %v610 = vshrl.u32 %v609, 7
        %v611 = vsub.s32 0, %v610
        %v612 = vrot.slane %v607, %v611
        %v618 = vunpack.c.l.b16 %v603
        %v619 = vunpack.c.l.b16 %v604
        %v620 = vunpack.c.l.b16 %v605
        %v621 = vunpack.c.l.b16 %v606
        %v622 = vpack.c.b16 %v619, %v618
        %v623 = vpack.c.b16 %v621, %v620
        %vm626 = vcmask 261120
        %v628 = vsel %vm626, %v602, 0
        %630 = vmatprep.subr.bf16.mxu0 0
        %631 = vmatpush1.bf16.msra.mxu0 0
        %632 = vmatprep.subr.bf16.mxu0 0
        %633 = vmatpush1.bf16.msra.mxu0 0
        %634 = vmatprep.subr.bf16.mxu0 0
        %635 = vmatpush1.bf16.msra.mxu0 0
        %636 = vmatprep.subr.bf16.mxu0 0
        %637 = vmatpush1.bf16.msra.mxu0 0
        %638 = vmatprep.subr.bf16.mxu0 0
        %639 = vmatpush1.bf16.msra.mxu0 0
        %640 = vmatprep.subr.bf16.mxu0 0
        %641 = vmatpush1.bf16.msra.mxu0 0
        %642 = vmatprep.subr.bf16.mxu0 0
        %643 = vmatpush1.bf16.msra.mxu0 %v623
        %644 = vmatprep.subr.bf16.mxu0 0
        %645 = vmatpush1.bf16.msra.mxu0 %v622
        %646 = vmatprep.subr.bf16.mxu0 0
        %647 = vmatpush2.bf16.msra.mxu0 0
        %648 = vmatprep.subr.bf16.mxu0 0
        %649 = vmatpush2.bf16.msra.mxu0 0
        %650 = vmatprep.subr.bf16.mxu0 0
        %651 = vmatpush2.bf16.msra.mxu0 0
        %652 = vmatprep.subr.bf16.mxu0 0
        %653 = vmatpush2.bf16.msra.mxu0 0
        %654 = vmatprep.subr.bf16.mxu0 0
        %655 = vmatpush2.bf16.msra.mxu0 0
        %656 = vmatprep.subr.bf16.mxu0 0
        %657 = vmatpush2.bf16.msra.mxu0 0
        %658 = vmatprep.subr.bf16.mxu0 0
        %659 = vmatpush2.bf16.msra.mxu0 0
        %660 = vmatprep.subr.bf16.mxu0 0
        %661 = vmatpush2.bf16.msra.mxu0 0
        %662 = vmatprep.mubr.bf16.mxu0 0
        %663 = vmatmul.mubr.bf16.gmra.mxu0 %v628
        %v664 = vpop.f32.mrf.mxu0
        %v665 = vadd.f32 %v612, %v664
        %v666 = vpop.f32.mrf.mxu0
        %v667 = vpop.f32.mrf.mxu0
        %v668 = vadd.f32 %v612, %v667
        %v669 = vpop.f32.mrf.mxu0
        %670 = vdwg.mxu0
        %v671 = vmul.f32 %v665, 0.2
        %v672 = vmul.f32 %v668, 0.2
        %v673 = vmax.f32 %v665, %v671
        %v674 = vmax.f32 %v668, %v672
        %v675 = vpack.c.bf16 %v674, %v673
        %v676 = vld [vmem:[%s4] sm:$0xff]
        %v677 = vld [vmem:[%s4 + $0x8] sm:$0xff]
        %v678 = vld [vmem:[%s4 + $0x10] sm:$0xff]
        %v679 = vld [vmem:[%s4 + $0x18] sm:$0xff]
        %v680 = vld [vmem:[%s10] sm:$0x3]
        %v682 = vlaneseq
        %v683 = vshrl.u32 %v682, 7
        %v684 = vsub.s32 0, %v683
        %v685 = vrot.slane %v680, %v684
        %v686 = vlaneseq
        %v687 = vshrl.u32 %v686, 7
        %v688 = vsub.s32 1, %v687
        %v689 = vrot.slane %v680, %v688
        %v696 = vunpack.c.l.b16 %v676
        %v697 = vunpack.c.h.b16 %v676
        %v698 = vunpack.c.l.b16 %v677
        %v699 = vunpack.c.h.b16 %v677
        %v700 = vunpack.c.l.b16 %v678
        %v701 = vunpack.c.h.b16 %v678
        %v702 = vunpack.c.l.b16 %v679
        %v703 = vunpack.c.h.b16 %v679
        %v704 = vpack.c.b16 %v698, %v696
        %v705 = vpack.c.b16 %v699, %v697
        %v706 = vpack.c.b16 %v702, %v700
        %v707 = vpack.c.b16 %v703, %v701
        %v713 = vsel %vm626, %v675, 0
        %715 = vmatprep.subr.bf16.mxu0 0
        %716 = vmatpush1.bf16.msra.mxu0 0
        %717 = vmatprep.subr.bf16.mxu0 0
        %718 = vmatpush1.bf16.msra.mxu0 0
        %719 = vmatprep.subr.bf16.mxu0 0
        %720 = vmatpush1.bf16.msra.mxu0 0
        %721 = vmatprep.subr.bf16.mxu0 0
        %722 = vmatpush1.bf16.msra.mxu0 0
        %723 = vmatprep.subr.bf16.mxu0 0
        %724 = vmatpush1.bf16.msra.mxu0 0
        %725 = vmatprep.subr.bf16.mxu0 0
        %726 = vmatpush1.bf16.msra.mxu0 0
        %727 = vmatprep.subr.bf16.mxu0 %v707
        %728 = vmatpush1.bf16.msra.mxu0 %v706
        %729 = vmatprep.subr.bf16.mxu0 %v705
        %730 = vmatpush1.bf16.msra.mxu0 %v704
        %731 = vmatprep.subr.bf16.mxu0 0
        %732 = vmatpush2.bf16.msra.mxu0 0
        %733 = vmatprep.subr.bf16.mxu0 0
        %734 = vmatpush2.bf16.msra.mxu0 0
        %735 = vmatprep.subr.bf16.mxu0 0
        %736 = vmatpush2.bf16.msra.mxu0 0
        %737 = vmatprep.subr.bf16.mxu0 0
        %738 = vmatpush2.bf16.msra.mxu0 0
        %739 = vmatprep.subr.bf16.mxu0 0
        %740 = vmatpush2.bf16.msra.mxu0 0
        %741 = vmatprep.subr.bf16.mxu0 0
        %742 = vmatpush2.bf16.msra.mxu0 0
        %743 = vmatprep.subr.bf16.mxu0 0
        %744 = vmatpush2.bf16.msra.mxu0 0
        %745 = vmatprep.subr.bf16.mxu0 0
        %746 = vmatpush2.bf16.msra.mxu0 0
        %747 = vmatprep.mubr.bf16.mxu0 0
        %748 = vmatmul.mubr.bf16.gmra.mxu0 %v713
        %v749 = vpop.f32.mrf.mxu0
        %v750 = vadd.f32 %v685, %v749
        %v751 = vpop.f32.mrf.mxu0
        %v752 = vadd.f32 %v689, %v751
        %v753 = vpop.f32.mrf.mxu0
        %v754 = vadd.f32 %v685, %v753
        %v755 = vpop.f32.mrf.mxu0
        %v756 = vadd.f32 %v689, %v755
        %757 = vdwg.mxu0
        %v758 = vmul.f32 %v752, 0.5
        %v759 = vmul.f32 %v756, 0.5
        %v760 = vmul.f32 %v758, 1.442695
        %v761 = vpow.pop %v760
        %v762 = vmul.f32 %v759, 1.442695
        %v763 = vpow.pop %v762
        %v764 = vld [vmem:[%s503] sm:$0xff]
        %v765 = vld [vmem:[%s503 + $0x8] sm:$0xff]
        %v766 = vmul.f32 %v761, %v764
        %v767 = vmul.f32 %v763, %v765
        %v768 = vadd.f32 %v750, %v766
        %v769 = vadd.f32 %v754, %v767
        %v770 = vpack.c.bf16 %v769, %v768
        %v771 = vld [vmem:[%s5] sm:$0xf]
        %v772 = vld [vmem:[%s5 + $0x4] sm:$0xf]
        %v773 = vld [vmem:[%s5 + $0x8] sm:$0xf]
        %v774 = vld [vmem:[%s5 + $0xc] sm:$0xf]
        %v775 = vld [vmem:[%s5 + $0x10] sm:$0xf]
        %v776 = vld [vmem:[%s5 + $0x14] sm:$0xf]
        %v777 = vld [vmem:[%s5 + $0x18] sm:$0xf]
        %v778 = vld [vmem:[%s5 + $0x1c] sm:$0xf]
        %v779 = vld [vmem:[%s5 + $0x20] sm:$0xf]
        %v780 = vld [vmem:[%s5 + $0x24] sm:$0xf]
        %v781 = vld [vmem:[%s5 + $0x28] sm:$0xf]
        %v782 = vld [vmem:[%s5 + $0x2c] sm:$0xf]
        %v783 = vld [vmem:[%s5 + $0x30] sm:$0xf]
        %v784 = vld [vmem:[%s5 + $0x34] sm:$0xf]
        %v785 = vld [vmem:[%s5 + $0x38] sm:$0xf]
        %v786 = vld [vmem:[%s5 + $0x3c] sm:$0xf]
        %v787 = vld [vmem:[%s11] sm:$0x1]
        %v789 = vlaneseq
        %v790 = vshrl.u32 %v789, 7
        %v791 = vsub.s32 0, %v790
        %v792 = vrot.slane %v787, %v791
        %v810 = vunpack.c.l.b16 %v771
        %v811 = vunpack.c.l.b16 %v772
        %v812 = vunpack.c.l.b16 %v773
        %v813 = vunpack.c.l.b16 %v774
        %v814 = vunpack.c.l.b16 %v775
        %v815 = vunpack.c.l.b16 %v776
        %v816 = vunpack.c.l.b16 %v777
        %v817 = vunpack.c.l.b16 %v778
        %v818 = vunpack.c.l.b16 %v779
        %v819 = vunpack.c.l.b16 %v780
        %v820 = vunpack.c.l.b16 %v781
        %v821 = vunpack.c.l.b16 %v782
        %v822 = vunpack.c.l.b16 %v783
        %v823 = vunpack.c.l.b16 %v784
        %v824 = vunpack.c.l.b16 %v785
        %v825 = vunpack.c.l.b16 %v786
        %v826 = vpack.c.b16 %v811, %v810
        %v827 = vpack.c.b16 %v813, %v812
        %v828 = vpack.c.b16 %v815, %v814
        %v829 = vpack.c.b16 %v817, %v816
        %v830 = vpack.c.b16 %v819, %v818
        %v831 = vpack.c.b16 %v821, %v820
        %v832 = vpack.c.b16 %v823, %v822
        %v833 = vpack.c.b16 %v825, %v824
        %842 = vmatprep.subr.bf16.mxu0 0
        %843 = vmatpush1.bf16.msra.mxu0 %v833
        %844 = vmatprep.subr.bf16.mxu0 0
        %845 = vmatpush1.bf16.msra.mxu0 %v832
        %846 = vmatprep.subr.bf16.mxu0 0
        %847 = vmatpush1.bf16.msra.mxu0 %v831
        %848 = vmatprep.subr.bf16.mxu0 0
        %849 = vmatpush1.bf16.msra.mxu0 %v830
        %850 = vmatprep.subr.bf16.mxu0 0
        %851 = vmatpush1.bf16.msra.mxu0 %v829
        %852 = vmatprep.subr.bf16.mxu0 0
        %853 = vmatpush1.bf16.msra.mxu0 %v828
        %854 = vmatprep.subr.bf16.mxu0 0
        %855 = vmatpush1.bf16.msra.mxu0 %v827
        %856 = vmatprep.subr.bf16.mxu0 0
        %857 = vmatpush1.bf16.msra.mxu0 %v826
        %858 = vmatprep.subr.bf16.mxu0 0
        %859 = vmatpush2.bf16.msra.mxu0 0
        %860 = vmatprep.subr.bf16.mxu0 0
        %861 = vmatpush2.bf16.msra.mxu0 0
        %862 = vmatprep.subr.bf16.mxu0 0
        %863 = vmatpush2.bf16.msra.mxu0 0
        %864 = vmatprep.subr.bf16.mxu0 0
        %865 = vmatpush2.bf16.msra.mxu0 0
        %866 = vmatprep.subr.bf16.mxu0 0
        %867 = vmatpush2.bf16.msra.mxu0 0
        %868 = vmatprep.subr.bf16.mxu0 0
        %869 = vmatpush2.bf16.msra.mxu0 0
        %870 = vmatprep.subr.bf16.mxu0 0
        %871 = vmatpush2.bf16.msra.mxu0 0
        %872 = vmatprep.subr.bf16.mxu0 0
        %873 = vmatpush2.bf16.msra.mxu0 0
        %874 = vmatprep.mubr.bf16.mxu0 0
        %875 = vmatmul.mubr.bf16.gmra.mxu0 %v770
        %v876 = vpop.f32.mrf.mxu0
        %v877 = vadd.f32 %v792, %v876
        %v878 = vpop.f32.mrf.mxu0
        %v879 = vpop.f32.mrf.mxu0
        %v880 = vadd.f32 %v792, %v879
        %v881 = vpop.f32.mrf.mxu0
        %882 = vdwg.mxu0
        %v883 = vmul.f32 %v877, 0.2
        %v884 = vmul.f32 %v880, 0.2
        %v885 = vmax.f32 %v877, %v883
        %v886 = vmax.f32 %v880, %v884
        %v887 = vpack.c.bf16 %v886, %v885
        %v888 = vld [vmem:[%s6] sm:$0xf]
        %v889 = vld [vmem:[%s6 + $0x4] sm:$0xf]
        %v890 = vld [vmem:[%s6 + $0x8] sm:$0xf]
        %v891 = vld [vmem:[%s6 + $0xc] sm:$0xf]
        %v892 = vld [vmem:[%s12] sm:$0x1]
        %v894 = vlaneseq
        %v895 = vshrl.u32 %v894, 7
        %v896 = vsub.s32 0, %v895
        %v897 = vrot.slane %v892, %v896
        %v903 = vunpack.c.l.b16 %v888
        %v904 = vunpack.c.l.b16 %v889
        %v905 = vunpack.c.l.b16 %v890
        %v906 = vunpack.c.l.b16 %v891
        %v907 = vpack.c.b16 %v904, %v903
        %v908 = vpack.c.b16 %v906, %v905
        %v912 = vsel %vm626, %v887, 0
        %914 = vmatprep.subr.bf16.mxu0 0
        %915 = vmatpush1.bf16.msra.mxu0 0
        %916 = vmatprep.subr.bf16.mxu0 0
        %917 = vmatpush1.bf16.msra.mxu0 0
        %918 = vmatprep.subr.bf16.mxu0 0
        %919 = vmatpush1.bf16.msra.mxu0 0
        %920 = vmatprep.subr.bf16.mxu0 0
        %921 = vmatpush1.bf16.msra.mxu0 0
        %922 = vmatprep.subr.bf16.mxu0 0
        %923 = vmatpush1.bf16.msra.mxu0 0
        %924 = vmatprep.subr.bf16.mxu0 0
        %925 = vmatpush1.bf16.msra.mxu0 0
        %926 = vmatprep.subr.bf16.mxu0 0
        %927 = vmatpush1.bf16.msra.mxu0 %v908
        %928 = vmatprep.subr.bf16.mxu0 0
        %929 = vmatpush1.bf16.msra.mxu0 %v907
        %930 = vmatprep.subr.bf16.mxu0 0
        %931 = vmatpush2.bf16.msra.mxu0 0
        %932 = vmatprep.subr.bf16.mxu0 0
        %933 = vmatpush2.bf16.msra.mxu0 0
        %934 = vmatprep.subr.bf16.mxu0 0
        %935 = vmatpush2.bf16.msra.mxu0 0
        %936 = vmatprep.subr.bf16.mxu0 0
        %937 = vmatpush2.bf16.msra.mxu0 0
        %938 = vmatprep.subr.bf16.mxu0 0
        %939 = vmatpush2.bf16.msra.mxu0 0
        %940 = vmatprep.subr.bf16.mxu0 0
        %941 = vmatpush2.bf16.msra.mxu0 0
        %942 = vmatprep.subr.bf16.mxu0 0
        %943 = vmatpush2.bf16.msra.mxu0 0
        %944 = vmatprep.subr.bf16.mxu0 0
        %945 = vmatpush2.bf16.msra.mxu0 0
        %946 = vmatprep.mubr.bf16.mxu0 0
        %947 = vmatmul.mubr.bf16.gmra.mxu0 %v912
        %v948 = vpop.f32.mrf.mxu0
        %v949 = vadd.f32 %v897, %v948
        %v950 = vpop.f32.mrf.mxu0
        %v951 = vpop.f32.mrf.mxu0
        %v952 = vadd.f32 %v897, %v951
        %v953 = vpop.f32.mrf.mxu0
        %954 = vdwg.mxu0
        %v955 = vmul.f32 %v949, 0.2
        %v956 = vmul.f32 %v952, 0.2
        %v957 = vmax.f32 %v949, %v955
        %v958 = vmax.f32 %v952, %v956
        %v959 = vpack.c.bf16 %v958, %v957
        %v960 = vld [vmem:[#allocation2] sm:$0xf]
        %v961 = vld [vmem:[#allocation2 + $0x4] sm:$0xf]
        %v962 = vld [vmem:[#allocation2 + $0x8] sm:$0xf]
        %v963 = vld [vmem:[#allocation2 + $0xc] sm:$0xf]
        %v964 = vld [vmem:[%s13] sm:$0x1]
        %v966 = vlaneseq
        %v967 = vshrl.u32 %v966, 7
        %v968 = vsub.s32 0, %v967
        %v969 = vrot.slane %v964, %v968
        %v975 = vunpack.c.l.b16 %v960
        %v976 = vunpack.c.l.b16 %v961
        %v977 = vunpack.c.l.b16 %v962
        %v978 = vunpack.c.l.b16 %v963
        %v979 = vpack.c.b16 %v976, %v975
        %v980 = vpack.c.b16 %v978, %v977
        %v984 = vsel %vm626, %v959, 0
        %986 = vmatprep.subr.bf16.mxu0 0
        %987 = vmatpush1.bf16.msra.mxu0 0
        %988 = vmatprep.subr.bf16.mxu0 0
        %989 = vmatpush1.bf16.msra.mxu0 0
        %990 = vmatprep.subr.bf16.mxu0 0
        %991 = vmatpush1.bf16.msra.mxu0 0
        %992 = vmatprep.subr.bf16.mxu0 0
        %993 = vmatpush1.bf16.msra.mxu0 0
        %994 = vmatprep.subr.bf16.mxu0 0
        %995 = vmatpush1.bf16.msra.mxu0 0
        %996 = vmatprep.subr.bf16.mxu0 0
        %997 = vmatpush1.bf16.msra.mxu0 0
        %998 = vmatprep.subr.bf16.mxu0 0
        %999 = vmatpush1.bf16.msra.mxu0 %v980
        %1000 = vmatprep.subr.bf16.mxu0 0
        %1001 = vmatpush1.bf16.msra.mxu0 %v979
        %1002 = vmatprep.subr.bf16.mxu0 0
        %1003 = vmatpush2.bf16.msra.mxu0 0
        %1004 = vmatprep.subr.bf16.mxu0 0
        %1005 = vmatpush2.bf16.msra.mxu0 0
        %1006 = vmatprep.subr.bf16.mxu0 0
        %1007 = vmatpush2.bf16.msra.mxu0 0
        %1008 = vmatprep.subr.bf16.mxu0 0
        %1009 = vmatpush2.bf16.msra.mxu0 0
        %1010 = vmatprep.subr.bf16.mxu0 0
        %1011 = vmatpush2.bf16.msra.mxu0 0
        %1012 = vmatprep.subr.bf16.mxu0 0
        %1013 = vmatpush2.bf16.msra.mxu0 0
        %1014 = vmatprep.subr.bf16.mxu0 0
        %1015 = vmatpush2.bf16.msra.mxu0 0
        %1016 = vmatprep.subr.bf16.mxu0 0
        %1017 = vmatpush2.bf16.msra.mxu0 0
        %1018 = vmatprep.mubr.bf16.mxu0 0
        %1019 = vmatmul.mubr.bf16.gmra.mxu0 %v984
        %v1020 = vpop.f32.mrf.mxu0
        %v1021 = vadd.f32 %v969, %v1020
        %v1022 = vpop.f32.mrf.mxu0
        %v1023 = vpop.f32.mrf.mxu0
        %v1024 = vadd.f32 %v969, %v1023
        %v1025 = vpop.f32.mrf.mxu0
        %1026 = vdwg.mxu0
        %v1027 = vsub.f32 0.0, %v1021
        %v1028 = vsub.f32 0.0, %v1024
        %v1029 = vmul.f32 %v1027, 1.442695
        %v1030 = vpow.pop %v1029
        %v1031 = vmul.f32 %v1028, 1.442695
        %v1032 = vpow.pop %v1031
        %v1033 = vadd.f32 %v1030, 1.0
        %v1034 = vadd.f32 %v1032, 1.0
        %v1035 = vrcp.pop %v1033
        %v1036 = vrcp.pop %v1034
        %v1037 = vmax.f32 %v1035, 0.0
        %v1038 = vmax.f32 %v1036, 0.0
        %v1039 = vmin.f32 %v1037, 1.0
        %v1040 = vmin.f32 %v1038, 1.0
        %1041 = vst [vmem:[%s492] sm:$0xff] %v1039
        %1042 = vst [vmem:[%s492 + $0x18] sm:$0xff] %v1040
        %1043 = vst [vmem:[%s492 + $0x8] sm:$0xff] %v750
        %1044 = vst [vmem:[%s492 + $0x10] sm:$0xff] %v752
        %1045 = vst [vmem:[%s492 + $0x20] sm:$0xff] %v754
        %1046 = vst [vmem:[%s492 + $0x28] sm:$0xff] %v756
        %s1047 = sand.u32 %s341, 1
        %s1048 = scalar_lea.sflag [#allocation4], %s1047
        %s1049 = sand.u32 %s341, 1
        %s1050 = smul.addr %s1049, 48
        %s1051 = scalar_lea.vmem [#allocation5], %s1050
        // Predicated region
        $region81: #{tpu_custom_call.1} parent=75 // pred_check
          %p1052 = pneg %p351
        $region82: #{tpu_custom_call.1} parent=75 // pred_check_branch
          %1054 = sbr.rel (%p1052) target = $region84
        $region83: #{tpu_custom_call.1} parent=75 // pred_region
          %s1055 = smul.u32 2, %s29
          %s1057 = ssub.s32 768, 768
          %1058 = vsyncadd %s1048, %s1057
          %s1059 = smul.addr %s1055, 3
          %s1060 = smul.addr %s1059, 128
          %s1061 = scalar_lea.hbm %s14, %s1060
          %s1062 = sshll.u32 %s1051, 4
          %s1063 = int_to_ptr.vmem [resolvable:$true] %s1062
          %1068 = dma.vmem_to_hbm [thread:$0]  %s1063, 768, %s1061, %s1048, 384, 384, 24
        $region84: #{tpu_custom_call.1} parent=75 // pred_fallthru
          _
      $region76: #{tpu_custom_call.1} parent=5 // pred_fallthru
        _
      %p1069 = scmp.le.s32.totalorder 2, %s24
      // Predicated region
      $region85: #{tpu_custom_call.1} parent=5 // pred_check
        %p1070 = pneg %p1069
      $region86: #{tpu_custom_call.1} parent=5 // pred_check_branch
        %1072 = sbr.rel (%p1070) target = $region88
      $region87: #{tpu_custom_call.1} parent=5 // pred_region
        %s1073 = ssub.s32 %s24, 2
        // Predicated region
        $region89: #{tpu_custom_call.1} parent=87 // pred_check
          %p1074 = pneg %p357
        $region90: #{tpu_custom_call.1} parent=87 // pred_check_branch
          %1076 = sbr.rel (%p1074) target = $region92
        $region91: #{tpu_custom_call.1} parent=87 // pred_region
          %s1077 = sand.u32 %s342, 1
          %s1078 = scalar_lea.sflag [#allocation4], %s1077
          %s1079 = sand.u32 %s342, 1
          %s1080 = smul.addr %s1079, 48
          %s1081 = scalar_lea.vmem [#allocation5], %s1080
          %1082 = dma.done %s1078, 768
        $region92: #{tpu_custom_call.1} parent=87 // pred_fallthru
          _
      $region88: #{tpu_custom_call.1} parent=5 // pred_fallthru
        _
    $region6: #{tpu_custom_call.1} parent=1 // loop_footer
      %s28 = sadd.s32 1, %s24
    $region7: #{tpu_custom_call.1} parent=1 // loop_footer_branch
      %23 = sbr.rel target = $region3
    $region8: #{tpu_custom_call.1} parent=1 // loop_exit
      _
    %1083 = vsyncpa [#allocation3], 1
    %s1084 = scalar_lea.sflag [#allocation3], 1
    %1085 = vsyncpa %s1084, 1
    %1086 = vsyncpa [#allocation4], 1
    %s1087 = scalar_lea.sflag [#allocation4], 1
    %1088 = vsyncpa %s1087, 1

</llo_original>
